<compile_context>
chip_gen: v7x
topology: tpu7x:2x2x1
jax: 0.10.0
libtpu: 0.0.40
codegen_flags: <defaults>
</compile_context>

<pallas_src>
import functools

import jax
import jax.numpy as jnp
from jax.experimental import pallas as pl
from jax.experimental.pallas import tpu as pltpu


def greatest_divisor(num: int, max_divisor: int):
    for i in range(max_divisor, 1, -1):
        if num % i == 0:
            return i
    return 1


def _round_up(x: int, m: int) -> int:
    return (x + m - 1) // m * m


def _vmem_budget_bytes() -> int:
    cap = 64 * 1024 * 1024                       # safe default (v7x physical)
    try:
        cap = int(pltpu.get_tpu_info().vmem_capacity_bytes)
    except Exception:
        pass
    return (3 * cap) // 4                        # 96 MiB v5e/v6e, 48 MiB v7x


# --------------------------------------------------------------------------
# In-kernel helpers (shared by the fused and two-phase kernels)
# --------------------------------------------------------------------------
def _conv_tile(x_ref, w_ref, b_ref, row0, *, KH, Wr, TP, cout_pad):
    """conv+bias for one spatial tile: sum of KH row-shifted bf16 matmuls."""
    acc = jnp.zeros((TP, cout_pad), jnp.float32)
    for ki in range(KH):
        # Aligned dynamic load straight from the resident input (no sliced
        # materialized window): row0 is a multiple of TP, ki*Wr of 16.
        xs = x_ref[pl.ds(row0 + ki * Wr, TP), :]          # (TP, KW*Cin) bf16
        acc = acc + jnp.dot(xs, w_ref[ki],
                            preferred_element_type=jnp.float32)
    return acc + b_ref[...]                               # (TP, cout_pad) f32


def _finalize_group_stats(stats_acc, s_ref, st_ref, cout_pad, inv_count, eps):
    """[sum_c | sumsq_c] accumulator -> per-channel (mean, inv_std)."""
    ch_sum = stats_acc[:, :cout_pad]
    ch_sq = stats_acc[:, cout_pad:]
    # Group reduction via thin one-hot (padded channels have all-zero rows).
    g_sum = jnp.dot(ch_sum, s_ref[...], preferred_element_type=jnp.float32)
    g_sq = jnp.dot(ch_sq, s_ref[...], preferred_element_type=jnp.float32)
    mean_g = g_sum * inv_count
    # Single-pass variance (E[y^2] - mean^2) in f32 over the full extent.
    # TODO(synk): switch to shifted/Welford accumulation if |mean| >> std.
    var_g = g_sq * inv_count - mean_g * mean_g
    inv_g = jax.lax.rsqrt(var_g + eps)
    mean_c = jnp.dot(mean_g, st_ref[...], preferred_element_type=jnp.float32)
    inv_c = jnp.dot(inv_g, st_ref[...], preferred_element_type=jnp.float32)
    return mean_c, inv_c


# --------------------------------------------------------------------------
# Fused kernel: conv + bias + GroupNorm stats + normalize + SiLU in one pass
# --------------------------------------------------------------------------
def _fused_kernel(x_ref, w_ref, b_ref, mask_ref, s_ref, st_ref, g_ref, be_ref,
                  o_ref, stats_acc, *, KH, Wr, TP, T, cout, cout_pad,
                  inv_count, eps, act):
    t = pl.program_id(1)
    row0 = pl.multiple_of(t * TP, TP)

    @pl.when(t == 0)
    def _init():
        stats_acc[...] = jnp.zeros_like(stats_acc)

    y = _conv_tile(x_ref, w_ref, b_ref, row0,
                   KH=KH, Wr=Wr, TP=TP, cout_pad=cout_pad)

    # Masked spatial reduction of [y, y*y] in one MXU push; stats are taken
    # from the in-register f32 y (never from a downcast copy).
    yy = jnp.concatenate([y, y * y], axis=1)              # (TP, 2*cout_pad)
    stats_acc[...] += jnp.dot(mask_ref[...], yy,
                              preferred_element_type=jnp.float32)

    # Park the un-normalized conv output in the per-n resident output block
    # (only the real Cout channels are ever written to HBM).
    o_ref[pl.ds(row0, TP), :] = y[:, :cout]

    @pl.when(t == T - 1)
    def _finalize():
        mean_c, inv_c = _finalize_group_stats(stats_acc, s_ref, st_ref,
                                              cout_pad, inv_count, eps)
        scale = (inv_c * g_ref[...])[:, :cout]            # hoisted (1, Cout)
        shift = (be_ref[...] - mean_c * inv_c * g_ref[...])[:, :cout]
        # Normalize + SiLU the resident block in place before writeback.
        # Junk (wrap / pitch-pad) columns are normalized too -- wasted VPU
        # work only, they are masked out of the stats and sliced in wrapper.
        for ct in range(T):
            yv = o_ref[ct * TP:(ct + 1) * TP, :]
            yn = yv * scale + shift
            if act:
                yn = yn * jax.nn.sigmoid(yn)              # SiLU (exp -> EUP)
            o_ref[ct * TP:(ct + 1) * TP, :] = yn


# --------------------------------------------------------------------------
# Two-phase fallback (activation too large to keep resident per n)
# --------------------------------------------------------------------------
def _conv_stats_kernel(x_ref, w_ref, b_ref, mask_ref, s_ref, st_ref,
                       y_ref, stats_ref, stats_acc, *, KH, Wr, TP, cout,
                       cout_pad, inv_count, eps):
    t = pl.program_id(1)
    row0 = pl.multiple_of(t * TP, TP)

    @pl.when(t == 0)
    def _init():
        stats_acc[...] = jnp.zeros_like(stats_acc)

    y = _conv_tile(x_ref, w_ref, b_ref, row0,
                   KH=KH, Wr=Wr, TP=TP, cout_pad=cout_pad)

    yy = jnp.concatenate([y, y * y], axis=1)
    stats_acc[...] += jnp.dot(mask_ref[...], yy,
                              preferred_element_type=jnp.float32)

    # bf16 intermediate halves the phase1-write / phase2-read HBM traffic;
    # stats were already taken from the f32 y above.
    y_ref[...] = y[:, :cout].astype(jnp.bfloat16)

    @pl.when(t == pl.num_programs(1) - 1)
    def _finalize():
        mean_c, inv_c = _finalize_group_stats(stats_acc, s_ref, st_ref,
                                              cout_pad, inv_count, eps)
        stats_ref[0:1, :] = mean_c
        stats_ref[1:2, :] = inv_c


def _norm_act_kernel(y_ref, stats_ref, g_ref, be_ref, o_ref, *, cout, act):
    y = y_ref[...].astype(jnp.float32)                    # (TP, Cout)
    scale = (stats_ref[1:2, :] * g_ref[...])[:, :cout]
    shift = (be_ref[...]
             - stats_ref[0:1, :] * stats_ref[1:2, :] * g_ref[...])[:, :cout]
    yn = y * scale + shift
    if act:
        yn = yn * jax.nn.sigmoid(yn)
    o_ref[...] = yn.astype(o_ref.dtype)


# --------------------------------------------------------------------------
# Wrapper
# --------------------------------------------------------------------------
def conv_bn_act(x, weight, bias, gamma, beta, *, kernel_size=3, stride=1,
                padding=0, eps=1e-5, act=True, tile_rows=None,
                force_two_phase=False):
    """x: (N, Cin, H, W) f32 NCHW.  weight: (Cout, Cin, KH, KW).  Returns NCHW f32."""
    N, Cin, H, W = x.shape
    Cout, Cin_w, KH, KW = weight.shape
    assert Cin_w == Cin and KH == kernel_size and KW == kernel_size
    # TODO(synk): stride > 1 (and the SeparableConv2d branch) not implemented.
    assert stride == 1

    Hp, Wp = H + 2 * padding, W + 2 * padding
    OH, OW = Hp - KH + 1, Wp - KW + 1
    assert OH > 0 and OW > 0

    # GroupNorm group layout (matches the PyTorch module's __init__ logic).
    num_groups = 16 if Cout % 16 == 0 else greatest_divisor(Cout, 16)
    cpg = Cout // num_groups

    # ---- static tiling ----
    cout_pad = _round_up(Cout, 128)          # matmul / stats lanes only
    KWC = KW * Cin                           # KW column taps packed into lanes
    # Row pitch padded to 16 so ki*Wr tap offsets stay sublane-aligned (bf16).
    Wr = _round_up(Wp, 16)
    P_out = OH * Wr                          # flat output incl. junk columns
    if tile_rows is None:
        TP = min(2048, _round_up(P_out, 256))
        if cout_pad > 256:
            TP = min(TP, 1024)
        # TODO(synk): sweep TP per generation (larger on v5e/v6e 128 MiB VMEM).
    else:
        TP = tile_rows
    assert TP % 256 == 0
    P_out_pad = _round_up(P_out, TP)
    T = P_out_pad // TP
    P_in_pad = P_out_pad + (KH - 1) * Wr

    # ---- wrapper-side layout glue (only a KW-fold of the input, not KH*KW) --
    xt = jnp.transpose(x, (0, 2, 3, 1))                     # NHWC
    if padding > 0:
        xt = jnp.pad(xt, ((0, 0), (padding, padding),
                          (padding, padding), (0, 0)))
    if Wr > Wp:
        xt = jnp.pad(xt, ((0, 0), (0, 0), (0, Wr - Wp), (0, 0)))
    x_row = xt.reshape(N, Hp * Wr, Cin)
    # Lane-pack the KW column taps: xk[n, p, kj*Cin + c] = x_row[n, p + kj, c]
    x_sh = jnp.pad(x_row, ((0, 0), (0, KW - 1), (0, 0)))
    xk = jnp.concatenate([x_sh[:, kj:kj + Hp * Wr, :] for kj in range(KW)],
                         axis=-1)
    xk = jnp.pad(xk, ((0, 0), (0, P_in_pad - Hp * Wr), (0, 0)))
    xk = xk.astype(jnp.bfloat16)                            # bf16 MXU operand

    # Per-row-tap weights: w_rows[ki, kj*Cin + c, o] = weight[o, c, ki, kj]
    w_rows = jnp.transpose(weight, (2, 3, 1, 0)).reshape(KH, KWC, Cout)
    w_rows = jnp.pad(w_rows, ((0, 0), (0, 0), (0, cout_pad - Cout)))
    w_rows = w_rows.astype(jnp.bfloat16)

    b_row = jnp.pad(bias.astype(jnp.float32).reshape(1, Cout),
                    ((0, 0), (0, cout_pad - Cout)))
    g_row = jnp.pad(gamma.astype(jnp.float32).reshape(1, Cout),
                    ((0, 0), (0, cout_pad - Cout)))
    be_row = jnp.pad(beta.astype(jnp.float32).reshape(1, Cout),
                     ((0, 0), (0, cout_pad - Cout)))

    # Validity mask over the flat output: drops the Wr-OW junk columns per row
    # and the tail padding from the GroupNorm statistics.
    pos = jnp.arange(P_out_pad, dtype=jnp.int32)
    valid = ((pos % Wr) < OW) & (pos < OH * Wr)
    mask = valid.astype(jnp.float32).reshape(T, 1, TP)

    # Thin one-hot group matrices (padded channels belong to no group).
    ch = jnp.arange(cout_pad)
    grp = jnp.arange(num_groups)
    s_mat = ((ch[:, None] // cpg == grp[None, :]) &
             (ch[:, None] < Cout)).astype(jnp.float32)      # (cout_pad, G)
    st_mat = s_mat.T                                        # (G, cout_pad)

    inv_count = 1.0 / float(OH * OW * cpg)

    # ---- VMEM budget / path selection ----
    budget = _vmem_budget_bytes()
    est_fused = (2 * P_in_pad * KWC * 2        # resident x (double-buffered)
                 + 2 * P_out_pad * Cout * 4    # resident per-n output block
                 + KH * KWC * cout_pad * 2     # weights
                 + 10 * TP * cout_pad * 4)     # per-tile temporaries headroom
    use_fused = (not force_two_phase) and est_fused <= budget
    cparams_red = pltpu.CompilerParams(
        dimension_semantics=("parallel", "arbitrary"),
        vmem_limit_bytes=budget)

    common_in_specs = [
        # Whole lane-packed image resident per n (read from HBM once per n).
        # TODO(synk): pipeline_mode=pl.Buffered(1) here would drop the double
        # buffer on v7x (x only changes at n boundaries); and for very large
        # images tile x with a halo'd window instead of keeping it resident.
        pl.BlockSpec((None, P_in_pad, KWC), lambda n, t: (n, 0, 0)),
        pl.BlockSpec((KH, KWC, cout_pad), lambda n, t: (0, 0, 0)),
        pl.BlockSpec((1, cout_pad), lambda n, t: (0, 0)),
        pl.BlockSpec((None, 1, TP), lambda n, t: (t, 0, 0)),
        pl.BlockSpec((cout_pad, num_groups), lambda n, t: (0, 0)),
        pl.BlockSpec((num_groups, cout_pad), lambda n, t: (0, 0)),
    ]

    if use_fused:
        kern = functools.partial(_fused_kernel, KH=KH, Wr=Wr, TP=TP, T=T,
                                 cout=Cout, cout_pad=cout_pad,
                                 inv_count=inv_count, eps=float(eps), act=act)
        out_flat = pl.pallas_call(
            kern,
            out_shape=jax.ShapeDtypeStruct((N, P_out_pad, Cout), jnp.float32),
            grid_spec=pltpu.PrefetchScalarGridSpec(
                num_scalar_prefetch=0,
                grid=(N, T),
                in_specs=common_in_specs + [
                    pl.BlockSpec((1, cout_pad), lambda n, t: (0, 0)),  # gamma
                    pl.BlockSpec((1, cout_pad), lambda n, t: (0, 0)),  # beta
                ],
                out_specs=pl.BlockSpec((None, P_out_pad, Cout),
                                       lambda n, t: (n, 0, 0)),
                scratch_shapes=[pltpu.VMEM((1, 2 * cout_pad), jnp.float32)],
            ),
            compiler_params=cparams_red,
        )(xk, w_rows, b_row, mask, s_mat, st_mat, g_row, be_row)
    else:
        # ---- phase 1: conv + bias + per-group statistics (bf16 intermediate)
        p1 = functools.partial(_conv_stats_kernel, KH=KH, Wr=Wr, TP=TP,
                               cout=Cout, cout_pad=cout_pad,
                               inv_count=inv_count, eps=float(eps))
        y_conv, stats = pl.pallas_call(
            p1,
            out_shape=(jax.ShapeDtypeStruct((N, P_out_pad, Cout), jnp.bfloat16),
                       jax.ShapeDtypeStruct((N, 2, cout_pad), jnp.float32)),
            grid_spec=pltpu.PrefetchScalarGridSpec(
                num_scalar_prefetch=0,
                grid=(N, T),
                in_specs=common_in_specs,
                out_specs=(
                    pl.BlockSpec((None, TP, Cout), lambda n, t: (n, t, 0)),
                    pl.BlockSpec((None, 2, cout_pad), lambda n, t: (n, 0, 0)),
                ),
                scratch_shapes=[pltpu.VMEM((1, 2 * cout_pad), jnp.float32)],
            ),
            compiler_params=cparams_red,
        )(xk, w_rows, b_row, mask, s_mat, st_mat)

        # ---- phase 2: normalize + SiLU (fully parallel) ----
        p2 = functools.partial(_norm_act_kernel, cout=Cout, act=act)
        out_flat = pl.pallas_call(
            p2,
            out_shape=jax.ShapeDtypeStruct((N, P_out_pad, Cout), jnp.float32),
            grid_spec=pltpu.PrefetchScalarGridSpec(
                num_scalar_prefetch=0,
                grid=(N, T),
                in_specs=[
                    pl.BlockSpec((None, TP, Cout), lambda n, t: (n, t, 0)),
                    pl.BlockSpec((None, 2, cout_pad), lambda n, t: (n, 0, 0)),
                    pl.BlockSpec((1, cout_pad), lambda n, t: (0, 0)),
                    pl.BlockSpec((1, cout_pad), lambda n, t: (0, 0)),
                ],
                out_specs=pl.BlockSpec((None, TP, Cout),
                                       lambda n, t: (n, t, 0)),
            ),
            compiler_params=pltpu.CompilerParams(
                dimension_semantics=("parallel", "parallel"),
                vmem_limit_bytes=budget),
        )(y_conv, stats, g_row, be_row)

    # (N, P_out_pad, Cout) -> NCHW, dropping junk columns / tail padding.
    # TODO(synk): accept/return NHWC (or fuse into the consumer) to avoid this
    # XLA transpose pass over the output.
    out = out_flat[:, :OH * Wr, :].reshape(N, OH, Wr, Cout)[:, :, :OW, :]
    return jnp.transpose(out, (0, 3, 1, 2))


# --------------------------------------------------------------------------
# Plain-JAX reference: Conv2d -> GroupNorm -> SiLU, NCHW.
# --------------------------------------------------------------------------
def _reference(x, weight, bias, gamma, beta, *, padding=0, eps=1e-5, act=True):
    y = jax.lax.conv_general_dilated(
        x, weight, window_strides=(1, 1),
        padding=[(padding, padding), (padding, padding)],
        dimension_numbers=("NCHW", "OIHW", "NCHW"))
    y = y + bias[None, :, None, None]
    N, C, Hh, Ww = y.shape
    num_groups = 16 if C % 16 == 0 else greatest_divisor(C, 16)
    cpg = C // num_groups
    yg = y.reshape(N, num_groups, cpg, Hh, Ww)
    mean = yg.mean(axis=(2, 3, 4), keepdims=True)
    var = yg.var(axis=(2, 3, 4), keepdims=True)
    yn = ((yg - mean) * jax.lax.rsqrt(var + eps)).reshape(N, C, Hh, Ww)
    yn = yn * gamma[None, :, None, None] + beta[None, :, None, None]
    return yn * jax.nn.sigmoid(yn) if act else yn


if __name__ == "__main__":
    key = jax.random.PRNGKey(0)
    N, Cin, H, W = 2, 4, 16, 16
    Cout, KH, KW = 32, 3, 3

    kx, kw, kb, kg, kbe = jax.random.split(key, 5)
    x = jax.random.normal(kx, (N, Cin, H, W), dtype=jnp.float32)
    weight = jax.random.normal(kw, (Cout, Cin, KH, KW), dtype=jnp.float32) * 0.1
    bias = jax.random.normal(kb, (Cout,), dtype=jnp.float32) * 0.1
    gamma = 1.0 + 0.1 * jax.random.normal(kg, (Cout,), dtype=jnp.float32)
    beta = 0.1 * jax.random.normal(kbe, (Cout,), dtype=jnp.float32)

    def _check(padding, **kwargs):
        out = jax.block_until_ready(
            conv_bn_act(x, weight, bias, gamma, beta, kernel_size=3, stride=1,
                        padding=padding, **kwargs))
        ref = _reference(x, weight, bias, gamma, beta, padding=padding)
        assert out.shape == ref.shape, (out.shape, ref.shape)
        err = float(jnp.max(jnp.abs(out - ref)))
        assert err < 5e-2, err     # bf16 MXU operands -> relaxed tolerance

    _check(0)                                         # fused path, single tile
    _check(1, tile_rows=256)                          # fused path, T=2 accumulation
    _check(1, tile_rows=256, force_two_phase=True)    # two-phase fallback path

    print("KERNEL_OK")
</pallas_src>

<mosaic_0001>
module attributes {stable_mosaic.version = 11 : i64} {
  func.func @_fused_kernel(%arg0: i32, %arg1: i32, %arg2: memref<1x288x12xbf16, #tpu.memory_space<vmem>>, %arg3: memref<3x12x128xbf16, #tpu.memory_space<vmem>>, %arg4: memref<1x128xf32, #tpu.memory_space<vmem>>, %arg5: memref<1x1x256xf32, #tpu.memory_space<vmem>>, %arg6: memref<128x16xf32, #tpu.memory_space<vmem>>, %arg7: memref<16x128xf32, #tpu.memory_space<vmem>>, %arg8: memref<1x128xf32, #tpu.memory_space<vmem>>, %arg9: memref<1x128xf32, #tpu.memory_space<vmem>>, %arg10: memref<1x256x32xf32, #tpu.memory_space<vmem>>, %arg11: memref<1x256xf32, #tpu.memory_space<vmem>>) attributes {dimension_semantics = [#tpu.dimension_semantics<parallel>, #tpu.dimension_semantics<arbitrary>], iteration_bounds = array<i64: 2, 1>, scalar_prefetch = 0 : i64, scratch_operands = 1 : i64, tpu.core_type = #tpu.core_type<tc>, window_params = [{transform_indices = @transform_0, window_bounds = array<i64: 1, 288, 12>}, {pipeline_mode = #tpu.pipeline_mode<synchronous>, transform_indices = @transform_1, window_bounds = array<i64: 3, 12, 128>}, {pipeline_mode = #tpu.pipeline_mode<synchronous>, transform_indices = @transform_2, window_bounds = array<i64: 1, 128>}, {transform_indices = @transform_3, window_bounds = array<i64: 1, 1, 256>}, {pipeline_mode = #tpu.pipeline_mode<synchronous>, transform_indices = @transform_4, window_bounds = array<i64: 128, 16>}, {pipeline_mode = #tpu.pipeline_mode<synchronous>, transform_indices = @transform_5, window_bounds = array<i64: 16, 128>}, {pipeline_mode = #tpu.pipeline_mode<synchronous>, transform_indices = @transform_6, window_bounds = array<i64: 1, 128>}, {pipeline_mode = #tpu.pipeline_mode<synchronous>, transform_indices = @transform_7, window_bounds = array<i64: 1, 128>}, {transform_indices = @transform_8, window_bounds = array<i64: 1, 256, 32>}]} {
    %c256_i32 = arith.constant 256 : i32
    %0 = arith.muli %arg1, %c256_i32 : i32
    %1 = tpu.assume_multiple %0, 256 : i32
    %c0_i32 = arith.constant 0 : i32
    %2 = arith.cmpi eq, %arg1, %c0_i32 : i32
    %3 = arith.extui %2 : i1 to i32
    %c0_i32_0 = arith.constant 0 : i32
    %4 = arith.cmpi ne, %3, %c0_i32_0 : i32
    scf.if %4 {
      %cst_31 = arith.constant 0.000000e+00 : f32
      %49 = vector.broadcast %cst_31 : f32 to vector<1x256xf32>
      %c0_32 = arith.constant 0 : index
      %c0_33 = arith.constant 0 : index
      %50 = vector.load %arg11[%c0_32, %c0_33] : memref<1x256xf32, #tpu.memory_space<vmem>>, vector<1x256xf32>
      tpu.vector_store %arg11[%c0_32, %c0_33], %49 {strides = array<i32>} : memref<1x256xf32, #tpu.memory_space<vmem>>, vector<1x256xf32>,
    } else {
    }
    %cst = arith.constant 0.000000e+00 : f32
    %5 = vector.broadcast %cst : f32 to vector<256x128xf32>
    %c0_i32_1 = arith.constant 0 : i32
    %6 = arith.addi %1, %c0_i32_1 : i32
    %c0 = arith.constant 0 : index
    %7 = arith.index_cast %6 : i32 to index
    %c0_2 = arith.constant 0 : index
    %8 = vector.load %arg2[%c0, %7, %c0_2] : memref<1x288x12xbf16, #tpu.memory_space<vmem>>, vector<1x256x12xbf16>
    %9 = vector.shape_cast %8 : vector<1x256x12xbf16> to vector<256x12xbf16>
    %c0_3 = arith.constant 0 : index
    %c0_4 = arith.constant 0 : index
    %c0_5 = arith.constant 0 : index
    %10 = vector.load %arg3[%c0_3, %c0_4, %c0_5] : memref<3x12x128xbf16, #tpu.memory_space<vmem>>, vector<1x12x128xbf16>
    %11 = vector.shape_cast %10 : vector<1x12x128xbf16> to vector<12x128xbf16>
    %cst_6 = arith.constant dense<0.000000e+00> : vector<256x128xf32>
    %12 = tpu.matmul %9, %11, %cst_6 {dimension_numbers = #tpu.dot_dimension_numbers<[1], [0], [0], [1], [0, 0, 1, 1], [], []>} : vector<256x12xbf16>, vector<12x128xbf16>, vector<256x128xf32> -> vector<256x128xf32>
    %13 = arith.addf %5, %12 : vector<256x128xf32>
    %c16_i32 = arith.constant 16 : i32
    %14 = arith.addi %1, %c16_i32 : i32
    %c0_7 = arith.constant 0 : index
    %15 = arith.index_cast %14 : i32 to index
    %c0_8 = arith.constant 0 : index
    %16 = vector.load %arg2[%c0_7, %15, %c0_8] : memref<1x288x12xbf16, #tpu.memory_space<vmem>>, vector<1x256x12xbf16>
    %17 = vector.shape_cast %16 : vector<1x256x12xbf16> to vector<256x12xbf16>
    %c1 = arith.constant 1 : index
    %c0_9 = arith.constant 0 : index
    %c0_10 = arith.constant 0 : index
    %18 = vector.load %arg3[%c1, %c0_9, %c0_10] : memref<3x12x128xbf16, #tpu.memory_space<vmem>>, vector<1x12x128xbf16>
    %19 = vector.shape_cast %18 : vector<1x12x128xbf16> to vector<12x128xbf16>
    %cst_11 = arith.constant dense<0.000000e+00> : vector<256x128xf32>
    %20 = tpu.matmul %17, %19, %cst_11 {dimension_numbers = #tpu.dot_dimension_numbers<[1], [0], [0], [1], [0, 0, 1, 1], [], []>} : vector<256x12xbf16>, vector<12x128xbf16>, vector<256x128xf32> -> vector<256x128xf32>
    %21 = arith.addf %13, %20 : vector<256x128xf32>
    %c32_i32 = arith.constant 32 : i32
    %22 = arith.addi %1, %c32_i32 : i32
    %c0_12 = arith.constant 0 : index
    %23 = arith.index_cast %22 : i32 to index
    %c0_13 = arith.constant 0 : index
    %24 = vector.load %arg2[%c0_12, %23, %c0_13] : memref<1x288x12xbf16, #tpu.memory_space<vmem>>, vector<1x256x12xbf16>
    %25 = vector.shape_cast %24 : vector<1x256x12xbf16> to vector<256x12xbf16>
    %c2 = arith.constant 2 : index
    %c0_14 = arith.constant 0 : index
    %c0_15 = arith.constant 0 : index
    %26 = vector.load %arg3[%c2, %c0_14, %c0_15] : memref<3x12x128xbf16, #tpu.memory_space<vmem>>, vector<1x12x128xbf16>
    %27 = vector.shape_cast %26 : vector<1x12x128xbf16> to vector<12x128xbf16>
    %cst_16 = arith.constant dense<0.000000e+00> : vector<256x128xf32>
    %28 = tpu.matmul %25, %27, %cst_16 {dimension_numbers = #tpu.dot_dimension_numbers<[1], [0], [0], [1], [0, 0, 1, 1], [], []>} : vector<256x12xbf16>, vector<12x128xbf16>, vector<256x128xf32> -> vector<256x128xf32>
    %29 = arith.addf %21, %28 : vector<256x128xf32>
    %c0_17 = arith.constant 0 : index
    %c0_18 = arith.constant 0 : index
    %30 = vector.load %arg4[%c0_17, %c0_18] : memref<1x128xf32, #tpu.memory_space<vmem>>, vector<1x128xf32>
    %31 = vector.broadcast %30 : vector<1x128xf32> to vector<256x128xf32>
    %32 = arith.addf %29, %31 : vector<256x128xf32>
    %33 = arith.mulf %32, %32 : vector<256x128xf32>
    %34 = tpu.concatenate %32, %33 in 1 : vector<256x128xf32>, vector<256x128xf32> -> vector<256x256xf32>
    %c0_19 = arith.constant 0 : index
    %c0_20 = arith.constant 0 : index
    %35 = vector.load %arg11[%c0_19, %c0_20] : memref<1x256xf32, #tpu.memory_space<vmem>>, vector<1x256xf32>
    %c0_21 = arith.constant 0 : index
    %c0_22 = arith.constant 0 : index
    %c0_23 = arith.constant 0 : index
    %36 = vector.load %arg5[%c0_21, %c0_22, %c0_23] : memref<1x1x256xf32, #tpu.memory_space<vmem>>, vector<1x1x256xf32>
    %37 = vector.shape_cast %36 : vector<1x1x256xf32> to vector<1x256xf32>
    %cst_24 = arith.constant dense<0.000000e+00> : vector<1x256xf32>
    %38 = tpu.matmul %37, %34, %cst_24 {dimension_numbers = #tpu.dot_dimension_numbers<[1], [0], [0], [1], [0, 0, 1, 1], [], []>} : vector<1x256xf32>, vector<256x256xf32>, vector<1x256xf32> -> vector<1x256xf32>
    %39 = arith.addf %35, %38 : vector<1x256xf32>
    %c0_25 = arith.constant 0 : index
    %c0_26 = arith.constant 0 : index
    %40 = vector.load %arg11[%c0_25, %c0_26] : memref<1x256xf32, #tpu.memory_space<vmem>>, vector<1x256xf32>
    tpu.vector_store %arg11[%c0_25, %c0_26], %39 {strides = array<i32>} : memref<1x256xf32, #tpu.memory_space<vmem>>, vector<1x256xf32>,
    %41 = vector.extract_strided_slice %32 {offsets = [0, 0], sizes = [256, 32], strides = [1, 1]} : vector<256x128xf32> to vector<256x32xf32>
    %c0_27 = arith.constant 0 : index
    %42 = arith.index_cast %1 : i32 to index
    %c0_28 = arith.constant 0 : index
    %43 = vector.load %arg10[%c0_27, %42, %c0_28] : memref<1x256x32xf32, #tpu.memory_space<vmem>>, vector<1x256x32xf32>
    %44 = vector.shape_cast %43 : vector<1x256x32xf32> to vector<256x32xf32>
    %45 = vector.shape_cast %41 : vector<256x32xf32> to vector<1x256x32xf32>
    tpu.vector_store %arg10[%c0_27, %42, %c0_28], %45 {strides = array<i32>} : memref<1x256x32xf32, #tpu.memory_space<vmem>>, vector<1x256x32xf32>,
    %c0_i32_29 = arith.constant 0 : i32
    %46 = arith.cmpi eq, %arg1, %c0_i32_29 : i32
    %47 = arith.extui %46 : i1 to i32
    %c0_i32_30 = arith.constant 0 : i32
    %48 = arith.cmpi ne, %47, %c0_i32_30 : i32
    scf.if %48 {
      %c0_31 = arith.constant 0 : index
      %c0_32 = arith.constant 0 : index
      %49 = vector.load %arg11[%c0_31, %c0_32] : memref<1x256xf32, #tpu.memory_space<vmem>>, vector<1x128xf32>
      %c0_33 = arith.constant 0 : index
      %c128 = arith.constant 128 : index
      %50 = vector.load %arg11[%c0_33, %c128] : memref<1x256xf32, #tpu.memory_space<vmem>>, vector<1x128xf32>
      %c0_34 = arith.constant 0 : index
      %c0_35 = arith.constant 0 : index
      %51 = vector.load %arg6[%c0_34, %c0_35] : memref<128x16xf32, #tpu.memory_space<vmem>>, vector<128x16xf32>
      %cst_36 = arith.constant dense<0.000000e+00> : vector<1x16xf32>
      %52 = tpu.matmul %49, %51, %cst_36 {dimension_numbers = #tpu.dot_dimension_numbers<[1], [0], [0], [1], [0, 0, 1, 1], [], []>} : vector<1x128xf32>, vector<128x16xf32>, vector<1x16xf32> -> vector<1x16xf32>
      %c0_37 = arith.constant 0 : index
      %c0_38 = arith.constant 0 : index
      %53 = vector.load %arg6[%c0_37, %c0_38] : memref<128x16xf32, #tpu.memory_space<vmem>>, vector<128x16xf32>
      %cst_39 = arith.constant dense<0.000000e+00> : vector<1x16xf32>
      %54 = tpu.matmul %50, %53, %cst_39 {dimension_numbers = #tpu.dot_dimension_numbers<[1], [0], [0], [1], [0, 0, 1, 1], [], []>} : vector<1x128xf32>, vector<128x16xf32>, vector<1x16xf32> -> vector<1x16xf32>
      %cst_40 = arith.constant 0.00255102036 : f32
      %55 = vector.broadcast %cst_40 : f32 to vector<1x16xf32>
      %56 = arith.mulf %52, %55 : vector<1x16xf32>
      %cst_41 = arith.constant 0.00255102036 : f32
      %57 = vector.broadcast %cst_41 : f32 to vector<1x16xf32>
      %58 = arith.mulf %54, %57 : vector<1x16xf32>
      %59 = arith.mulf %56, %56 : vector<1x16xf32>
      %60 = arith.subf %58, %59 : vector<1x16xf32>
      %cst_42 = arith.constant 9.99999974E-6 : f32
      %61 = vector.broadcast %cst_42 : f32 to vector<1x16xf32>
      %62 = arith.addf %60, %61 : vector<1x16xf32>
      %63 = math.rsqrt %62 : vector<1x16xf32>
      %c0_43 = arith.constant 0 : index
      %c0_44 = arith.constant 0 : index
      %64 = vector.load %arg7[%c0_43, %c0_44] : memref<16x128xf32, #tpu.memory_space<vmem>>, vector<16x128xf32>
      %cst_45 = arith.constant dense<0.000000e+00> : vector<1x128xf32>
      %65 = tpu.matmul %56, %64, %cst_45 {dimension_numbers = #tpu.dot_dimension_numbers<[1], [0], [0], [1], [0, 0, 1, 1], [], []>} : vector<1x16xf32>, vector<16x128xf32>, vector<1x128xf32> -> vector<1x128xf32>
      %c0_46 = arith.constant 0 : index
      %c0_47 = arith.constant 0 : index
      %66 = vector.load %arg7[%c0_46, %c0_47] : memref<16x128xf32, #tpu.memory_space<vmem>>, vector<16x128xf32>
      %cst_48 = arith.constant dense<0.000000e+00> : vector<1x128xf32>
      %67 = tpu.matmul %63, %66, %cst_48 {dimension_numbers = #tpu.dot_dimension_numbers<[1], [0], [0], [1], [0, 0, 1, 1], [], []>} : vector<1x16xf32>, vector<16x128xf32>, vector<1x128xf32> -> vector<1x128xf32>
      %c0_49 = arith.constant 0 : index
      %c0_50 = arith.constant 0 : index
      %68 = vector.load %arg8[%c0_49, %c0_50] : memref<1x128xf32, #tpu.memory_space<vmem>>, vector<1x128xf32>
      %69 = arith.mulf %67, %68 : vector<1x128xf32>
      %70 = vector.extract_strided_slice %69 {offsets = [0, 0], sizes = [1, 32], strides = [1, 1]} : vector<1x128xf32> to vector<1x32xf32>
      %c0_51 = arith.constant 0 : index
      %c0_52 = arith.constant 0 : index
      %71 = vector.load %arg9[%c0_51, %c0_52] : memref<1x128xf32, #tpu.memory_space<vmem>>, vector<1x128xf32>
      %72 = arith.mulf %65, %67 : vector<1x128xf32>
      %c0_53 = arith.constant 0 : index
      %c0_54 = arith.constant 0 : index
      %73 = vector.load %arg8[%c0_53, %c0_54] : memref<1x128xf32, #tpu.memory_space<vmem>>, vector<1x128xf32>
      %74 = arith.mulf %72, %73 : vector<1x128xf32>
      %75 = arith.subf %71, %74 : vector<1x128xf32>
      %76 = vector.extract_strided_slice %75 {offsets = [0, 0], sizes = [1, 32], strides = [1, 1]} : vector<1x128xf32> to vector<1x32xf32>
      %c0_55 = arith.constant 0 : index
      %c0_56 = arith.constant 0 : index
      %c0_57 = arith.constant 0 : index
      %77 = vector.load %arg10[%c0_55, %c0_56, %c0_57] : memref<1x256x32xf32, #tpu.memory_space<vmem>>, vector<1x256x32xf32>
      %78 = vector.shape_cast %77 : vector<1x256x32xf32> to vector<256x32xf32>
      %79 = vector.broadcast %70 : vector<1x32xf32> to vector<256x32xf32>
      %80 = arith.mulf %78, %79 : vector<256x32xf32>
      %81 = vector.broadcast %76 : vector<1x32xf32> to vector<256x32xf32>
      %82 = arith.addf %80, %81 : vector<256x32xf32>
      %83 = arith.negf %82 : vector<256x32xf32>
      %84 = math.exp %83 : vector<256x32xf32>
      %cst_58 = arith.constant 1.000000e+00 : f32
      %85 = vector.broadcast %cst_58 : f32 to vector<256x32xf32>
      %86 = arith.addf %85, %84 : vector<256x32xf32>
      %87 = arith.divf %85, %86 : vector<256x32xf32>
      %88 = arith.mulf %82, %87 : vector<256x32xf32>
      %c0_59 = arith.constant 0 : index
      %c0_60 = arith.constant 0 : index
      %c0_61 = arith.constant 0 : index
      %89 = vector.load %arg10[%c0_59, %c0_60, %c0_61] : memref<1x256x32xf32, #tpu.memory_space<vmem>>, vector<1x256x32xf32>
      %90 = vector.shape_cast %89 : vector<1x256x32xf32> to vector<256x32xf32>
      %91 = vector.shape_cast %88 : vector<256x32xf32> to vector<1x256x32xf32>
      tpu.vector_store %arg10[%c0_59, %c0_60, %c0_61], %91 {strides = array<i32>} : memref<1x256x32xf32, #tpu.memory_space<vmem>>, vector<1x256x32xf32>,
    } else {
    }
    return
  }
  func.func @transform_0(%arg0: i32, %arg1: i32) -> (i32, i32, i32) {
    %c0_i32 = arith.constant 0 : i32
    %c0_i32_0 = arith.constant 0 : i32
    %c0_i32_1 = arith.constant 0 : i32
    return %arg0, %c0_i32, %c0_i32_0 : i32, i32, i32
  }
  func.func @transform_1(%arg0: i32, %arg1: i32) -> (i32, i32, i32) {
    %c0_i32 = arith.constant 0 : i32
    %c0_i32_0 = arith.constant 0 : i32
    %c0_i32_1 = arith.constant 0 : i32
    %c0_i32_2 = arith.constant 0 : i32
    return %c0_i32, %c0_i32_0, %c0_i32_1 : i32, i32, i32
  }
  func.func @transform_2(%arg0: i32, %arg1: i32) -> (i32, i32) {
    %c0_i32 = arith.constant 0 : i32
    %c0_i32_0 = arith.constant 0 : i32
    %c0_i32_1 = arith.constant 0 : i32
    return %c0_i32, %c0_i32_0 : i32, i32
  }
  func.func @transform_3(%arg0: i32, %arg1: i32) -> (i32, i32, i32) {
    %c0_i32 = arith.constant 0 : i32
    %c0_i32_0 = arith.constant 0 : i32
    %c0_i32_1 = arith.constant 0 : i32
    return %arg1, %c0_i32, %c0_i32_0 : i32, i32, i32
  }
  func.func @transform_4(%arg0: i32, %arg1: i32) -> (i32, i32) {
    %c0_i32 = arith.constant 0 : i32
    %c0_i32_0 = arith.constant 0 : i32
    %c0_i32_1 = arith.constant 0 : i32
    return %c0_i32, %c0_i32_0 : i32, i32
  }
  func.func @transform_5(%arg0: i32, %arg1: i32) -> (i32, i32) {
    %c0_i32 = arith.constant 0 : i32
    %c0_i32_0 = arith.constant 0 : i32
    %c0_i32_1 = arith.constant 0 : i32
    return %c0_i32, %c0_i32_0 : i32, i32
  }
  func.func @transform_6(%arg0: i32, %arg1: i32) -> (i32, i32) {
    %c0_i32 = arith.constant 0 : i32
    %c0_i32_0 = arith.constant 0 : i32
    %c0_i32_1 = arith.constant 0 : i32
    return %c0_i32, %c0_i32_0 : i32, i32
  }
  func.func @transform_7(%arg0: i32, %arg1: i32) -> (i32, i32) {
    %c0_i32 = arith.constant 0 : i32
    %c0_i32_0 = arith.constant 0 : i32
    %c0_i32_1 = arith.constant 0 : i32
    return %c0_i32, %c0_i32_0 : i32, i32
  }
  func.func @transform_8(%arg0: i32, %arg1: i32) -> (i32, i32, i32) {
    %c0_i32 = arith.constant 0 : i32
    %c0_i32_0 = arith.constant 0 : i32
    %c0_i32_1 = arith.constant 0 : i32
    return %arg0, %c0_i32, %c0_i32_0 : i32, i32, i32
  }
}

</mosaic_0001>

<llo_original>
// kernel: tpu_custom_call.1
$region0: #{tpu_custom_call.1}
  #allocation0 [shape = 'u32[]', space=smem, size = 0x4, offset = 0x4, fixed_abs, tag = 'smem constant byte address 0x4 - core index']
  #allocation1 [shape = 'u32[144,128]{1,0:T(1,128)}', space=vmem, size = 0x12000, scoped, tag = 'internal scratch']
  #allocation2 [shape = 'f32[1,256]{1,0:T(1,128)}', space=vmem, size = 0x400, scoped, tag = 'scratch operand']
  %s0 = inlined_call_operand.vmem [shape: bf16[2,288,12], index: 0, kind: input, shape index: {}]
  %s1 = inlined_call_operand.vmem [shape: bf16[3,12,128], index: 1, kind: input, shape index: {}]
  %s2 = inlined_call_operand.vmem [shape: f32[1,128], index: 2, kind: input, shape index: {}]
  %s3 = inlined_call_operand.vmem [shape: f32[1,1,256], index: 3, kind: input, shape index: {}]
  %s4 = inlined_call_operand.vmem [shape: f32[128,16], index: 4, kind: input, shape index: {}]
  %s5 = inlined_call_operand.vmem [shape: f32[16,128], index: 5, kind: input, shape index: {}]
  %s6 = inlined_call_operand.vmem [shape: f32[1,128], index: 6, kind: input, shape index: {}]
  %s7 = inlined_call_operand.vmem [shape: f32[1,128], index: 7, kind: input, shape index: {}]
  %s8 = inlined_call_operand.vmem [shape: f32[2,256,32], index: 8, kind: output, shape index: {}]
  %s9 = sld [smem:[#allocation0]]
  $region73: #{tpu_custom_call.1} parent=0
    _
  %s11 = ssub.s32 1, %s9
  %s12 = scalar_select 0, %s11, %s9
  loop: start=0, step=1, limit=4
  $region2: #{tpu_custom_call.1} parent=0 // loop_pre_header
    _
  $region3: #{tpu_custom_call.1} parent=0 // loop_header
    %s14 = sphi 0, %s18
    %p15 = scmp.ge.s32.totalorder %s14, 4
    %s21 = sphi 0, %s33
    %s22 = sphi 0, %s29
    %s23 = sphi 0, %s21
    %s24 = sphi 0, %s22
    %s25 = sphi 0, %s23
    %s26 = sphi 0, %s24
    %s36 = sphi 0, %s38
    %s39 = sphi 0, %s36
    %s40 = sphi 0, %s39
    %s56 = sphi 0, %s40
    %s60 = sphi 0, %s60
    %s62 = sphi 0, %s60
    %s63 = sphi 0, %s62
    %s77 = sphi 0, %s63
    %s81 = sphi 0, %s81
    %s83 = sphi 0, %s81
    %s84 = sphi 0, %s83
    %s98 = sphi 0, %s84
    %s104 = sphi 0, %s106
    %s107 = sphi 0, %s104
    %s108 = sphi 0, %s107
    %s124 = sphi 0, %s108
    %s128 = sphi 0, %s128
    %s130 = sphi 0, %s128
    %s131 = sphi 0, %s130
    %s145 = sphi 0, %s131
    %s149 = sphi 0, %s149
    %s151 = sphi 0, %s149
    %s152 = sphi 0, %s151
    %s166 = sphi 0, %s152
    %s170 = sphi 0, %s170
    %s172 = sphi 0, %s170
    %s173 = sphi 0, %s172
    %s187 = sphi 0, %s173
    %s191 = sphi 0, %s191
    %s193 = sphi 0, %s191
    %s194 = sphi 0, %s193
    %s208 = sphi 0, %s194
    %s214 = sphi 0, %s216
    %s217 = sphi 0, %s214
    %s218 = sphi 0, %s217
    %s234 = sphi 0, %s218
  $region4: #{tpu_custom_call.1} parent=0 // loop_header_branch
    %17 = sbr.rel (%p15) target = $region8
  $region5: #{tpu_custom_call.1} parent=0 // loop_body
    %s19 = ssub.s32 %s14, 1
    %s20 = ssub.s32 %s14, 2
    %s27 = sadd.s32 1, %s22
    %p28 = scmp.ge.s32.totalorder %s27, 1
    %s29 = scalar_select %p28, 0, %s27
    %s30 = sadd.s32 1, %s21
    %s31 = scalar_select %p28, %s30, %s21
    %p32 = scmp.ge.s32.totalorder %s31, 2
    %s33 = scalar_select %p32, 0, %s31
    %s34 = ssub.s32 %s21, %s33
    %p35 = scmp.eq.s32.totalorder %s34, 0
    %s37 = sadd.s32 %s36, 1
    %s38 = scalar_select %p35, %s36, %s37
    %p41 = pneg %p35
    %p42 = scmp.eq.s32.totalorder %s14, 1
    %p43 = por %p41, %p42
    %p44 = scmp.ne.s32.totalorder %s36, %s39
    %p45 = scmp.eq.s32.totalorder %s14, 0
    %p46 = por %p44, %p45
    %p47 = scmp.ne.s32.totalorder %s36, %s39
    %p48 = scmp.eq.s32.totalorder %s19, 1
    %p49 = por %p47, %p48
    %p50 = scmp.ne.s32.totalorder %s39, %s40
    %p51 = scmp.eq.s32.totalorder %s19, 0
    %p52 = por %p50, %p51
    %p53 = scmp.ne.s32.totalorder %s39, %s40
    %p54 = scmp.eq.s32.totalorder %s20, 1
    %p55 = por %p53, %p54
    %p57 = scmp.ne.s32.totalorder %s40, %s56
    %p58 = scmp.eq.s32.totalorder %s20, 0
    %p59 = por %p57, %p58
    %s61 = sadd.s32 %s60, 1
    %p64 = scmp.eq.s32.totalorder %s14, 1
    %p65 = scmp.ne.s32.totalorder %s60, %s62
    %p66 = scmp.eq.s32.totalorder %s14, 0
    %p67 = por %p65, %p66
    %p68 = scmp.ne.s32.totalorder %s60, %s62
    %p69 = scmp.eq.s32.totalorder %s19, 1
    %p70 = por %p68, %p69
    %p71 = scmp.ne.s32.totalorder %s62, %s63
    %p72 = scmp.eq.s32.totalorder %s19, 0
    %p73 = por %p71, %p72
    %p74 = scmp.ne.s32.totalorder %s62, %s63
    %p75 = scmp.eq.s32.totalorder %s20, 1
    %p76 = por %p74, %p75
    %p78 = scmp.ne.s32.totalorder %s63, %s77
    %p79 = scmp.eq.s32.totalorder %s20, 0
    %p80 = por %p78, %p79
    %s82 = sadd.s32 %s81, 1
    %p85 = scmp.eq.s32.totalorder %s14, 1
    %p86 = scmp.ne.s32.totalorder %s81, %s83
    %p87 = scmp.eq.s32.totalorder %s14, 0
    %p88 = por %p86, %p87
    %p89 = scmp.ne.s32.totalorder %s81, %s83
    %p90 = scmp.eq.s32.totalorder %s19, 1
    %p91 = por %p89, %p90
    %p92 = scmp.ne.s32.totalorder %s83, %s84
    %p93 = scmp.eq.s32.totalorder %s19, 0
    %p94 = por %p92, %p93
    %p95 = scmp.ne.s32.totalorder %s83, %s84
    %p96 = scmp.eq.s32.totalorder %s20, 1
    %p97 = por %p95, %p96
    %p99 = scmp.ne.s32.totalorder %s84, %s98
    %p100 = scmp.eq.s32.totalorder %s20, 0
    %p101 = por %p99, %p100
    %s102 = ssub.s32 %s22, %s29
    %p103 = scmp.eq.s32.totalorder %s102, 0
    %s105 = sadd.s32 %s104, 1
    %s106 = scalar_select %p103, %s104, %s105
    %p109 = pneg %p103
    %p110 = scmp.eq.s32.totalorder %s14, 1
    %p111 = por %p109, %p110
    %p112 = scmp.ne.s32.totalorder %s104, %s107
    %p113 = scmp.eq.s32.totalorder %s14, 0
    %p114 = por %p112, %p113
    %p115 = scmp.ne.s32.totalorder %s104, %s107
    %p116 = scmp.eq.s32.totalorder %s19, 1
    %p117 = por %p115, %p116
    %p118 = scmp.ne.s32.totalorder %s107, %s108
    %p119 = scmp.eq.s32.totalorder %s19, 0
    %p120 = por %p118, %p119
    %p121 = scmp.ne.s32.totalorder %s107, %s108
    %p122 = scmp.eq.s32.totalorder %s20, 1
    %p123 = por %p121, %p122
    %p125 = scmp.ne.s32.totalorder %s108, %s124
    %p126 = scmp.eq.s32.totalorder %s20, 0
    %p127 = por %p125, %p126
    %s129 = sadd.s32 %s128, 1
    %p132 = scmp.eq.s32.totalorder %s14, 1
    %p133 = scmp.ne.s32.totalorder %s128, %s130
    %p134 = scmp.eq.s32.totalorder %s14, 0
    %p135 = por %p133, %p134
    %p136 = scmp.ne.s32.totalorder %s128, %s130
    %p137 = scmp.eq.s32.totalorder %s19, 1
    %p138 = por %p136, %p137
    %p139 = scmp.ne.s32.totalorder %s130, %s131
    %p140 = scmp.eq.s32.totalorder %s19, 0
    %p141 = por %p139, %p140
    %p142 = scmp.ne.s32.totalorder %s130, %s131
    %p143 = scmp.eq.s32.totalorder %s20, 1
    %p144 = por %p142, %p143
    %p146 = scmp.ne.s32.totalorder %s131, %s145
    %p147 = scmp.eq.s32.totalorder %s20, 0
    %p148 = por %p146, %p147
    %s150 = sadd.s32 %s149, 1
    %p153 = scmp.eq.s32.totalorder %s14, 1
    %p154 = scmp.ne.s32.totalorder %s149, %s151
    %p155 = scmp.eq.s32.totalorder %s14, 0
    %p156 = por %p154, %p155
    %p157 = scmp.ne.s32.totalorder %s149, %s151
    %p158 = scmp.eq.s32.totalorder %s19, 1
    %p159 = por %p157, %p158
    %p160 = scmp.ne.s32.totalorder %s151, %s152
    %p161 = scmp.eq.s32.totalorder %s19, 0
    %p162 = por %p160, %p161
    %p163 = scmp.ne.s32.totalorder %s151, %s152
    %p164 = scmp.eq.s32.totalorder %s20, 1
    %p165 = por %p163, %p164
    %p167 = scmp.ne.s32.totalorder %s152, %s166
    %p168 = scmp.eq.s32.totalorder %s20, 0
    %p169 = por %p167, %p168
    %s171 = sadd.s32 %s170, 1
    %p174 = scmp.eq.s32.totalorder %s14, 1
    %p175 = scmp.ne.s32.totalorder %s170, %s172
    %p176 = scmp.eq.s32.totalorder %s14, 0
    %p177 = por %p175, %p176
    %p178 = scmp.ne.s32.totalorder %s170, %s172
    %p179 = scmp.eq.s32.totalorder %s19, 1
    %p180 = por %p178, %p179
    %p181 = scmp.ne.s32.totalorder %s172, %s173
    %p182 = scmp.eq.s32.totalorder %s19, 0
    %p183 = por %p181, %p182
    %p184 = scmp.ne.s32.totalorder %s172, %s173
    %p185 = scmp.eq.s32.totalorder %s20, 1
    %p186 = por %p184, %p185
    %p188 = scmp.ne.s32.totalorder %s173, %s187
    %p189 = scmp.eq.s32.totalorder %s20, 0
    %p190 = por %p188, %p189
    %s192 = sadd.s32 %s191, 1
    %p195 = scmp.eq.s32.totalorder %s14, 1
    %p196 = scmp.ne.s32.totalorder %s191, %s193
    %p197 = scmp.eq.s32.totalorder %s14, 0
    %p198 = por %p196, %p197
    %p199 = scmp.ne.s32.totalorder %s191, %s193
    %p200 = scmp.eq.s32.totalorder %s19, 1
    %p201 = por %p199, %p200
    %p202 = scmp.ne.s32.totalorder %s193, %s194
    %p203 = scmp.eq.s32.totalorder %s19, 0
    %p204 = por %p202, %p203
    %p205 = scmp.ne.s32.totalorder %s193, %s194
    %p206 = scmp.eq.s32.totalorder %s20, 1
    %p207 = por %p205, %p206
    %p209 = scmp.ne.s32.totalorder %s194, %s208
    %p210 = scmp.eq.s32.totalorder %s20, 0
    %p211 = por %p209, %p210
    %s212 = ssub.s32 %s21, %s33
    %p213 = scmp.eq.s32.totalorder %s212, 0
    %s215 = sadd.s32 %s214, 1
    %s216 = scalar_select %p213, %s214, %s215
    %p219 = pneg %p213
    %p220 = scmp.eq.s32.totalorder %s14, 1
    %p221 = por %p219, %p220
    %p222 = scmp.ne.s32.totalorder %s214, %s217
    %p223 = scmp.eq.s32.totalorder %s14, 0
    %p224 = por %p222, %p223
    %p225 = scmp.ne.s32.totalorder %s214, %s217
    %p226 = scmp.eq.s32.totalorder %s19, 1
    %p227 = por %p225, %p226
    %p228 = scmp.ne.s32.totalorder %s217, %s218
    %p229 = scmp.eq.s32.totalorder %s19, 0
    %p230 = por %p228, %p229
    %p231 = scmp.ne.s32.totalorder %s217, %s218
    %p232 = scmp.eq.s32.totalorder %s20, 1
    %p233 = por %p231, %p232
    %p235 = scmp.ne.s32.totalorder %s218, %s234
    %p236 = scmp.eq.s32.totalorder %s20, 0
    %p237 = por %p235, %p236
    %p238 = scmp.le.s32.totalorder 1, %s14
    %p239 = scmp.lt.s32.totalorder %s14, 3
    %p240 = pnand %p238, %p239
    %p241 = pneg %p240
    // Predicated region
    $region9: #{tpu_custom_call.1} parent=5 // pred_check
      _
    $region10: #{tpu_custom_call.1} parent=5 // pred_check_branch
      %243 = sbr.rel (%p240) target = $region12
    $region11: #{tpu_custom_call.1} parent=5 // pred_region
      %s244 = ssub.s32 %s14, 1
      // Predicated region
      $region13: #{tpu_custom_call.1} parent=11 // pred_check
        %p245 = pneg %p73
      $region14: #{tpu_custom_call.1} parent=11 // pred_check_branch
        %247 = sbr.rel (%p245) target = $region16
      $region15: #{tpu_custom_call.1} parent=11 // pred_region
        _
      $region16: #{tpu_custom_call.1} parent=11 // pred_fallthru
        _
      // Predicated region
      $region17: #{tpu_custom_call.1} parent=11 // pred_check
        %p248 = pneg %p94
      $region18: #{tpu_custom_call.1} parent=11 // pred_check_branch
        %250 = sbr.rel (%p248) target = $region20
      $region19: #{tpu_custom_call.1} parent=11 // pred_region
        _
      $region20: #{tpu_custom_call.1} parent=11 // pred_fallthru
        _
      // Predicated region
      $region21: #{tpu_custom_call.1} parent=11 // pred_check
        %p251 = pneg %p120
      $region22: #{tpu_custom_call.1} parent=11 // pred_check_branch
        %253 = sbr.rel (%p251) target = $region24
      $region23: #{tpu_custom_call.1} parent=11 // pred_region
        %p254 = scmp.lt.s32.totalorder %s24, 0
        %s255 = scalar_select %p254, %s24, 0
        %s256 = smul.addr %s255, 2
        %s257 = scalar_lea.vmem %s3, %s256
      $region24: #{tpu_custom_call.1} parent=11 // pred_fallthru
        _
      // Predicated region
      $region25: #{tpu_custom_call.1} parent=11 // pred_check
        %p258 = pneg %p141
      $region26: #{tpu_custom_call.1} parent=11 // pred_check_branch
        %260 = sbr.rel (%p258) target = $region28
      $region27: #{tpu_custom_call.1} parent=11 // pred_region
        _
      $region28: #{tpu_custom_call.1} parent=11 // pred_fallthru
        _
      // Predicated region
      $region29: #{tpu_custom_call.1} parent=11 // pred_check
        %p261 = pneg %p162
      $region30: #{tpu_custom_call.1} parent=11 // pred_check_branch
        %263 = sbr.rel (%p261) target = $region32
      $region31: #{tpu_custom_call.1} parent=11 // pred_region
        _
      $region32: #{tpu_custom_call.1} parent=11 // pred_fallthru
        _
      // Predicated region
      $region33: #{tpu_custom_call.1} parent=11 // pred_check
        %p264 = pneg %p183
      $region34: #{tpu_custom_call.1} parent=11 // pred_check_branch
        %266 = sbr.rel (%p264) target = $region36
      $region35: #{tpu_custom_call.1} parent=11 // pred_region
        _
      $region36: #{tpu_custom_call.1} parent=11 // pred_fallthru
        _
      // Predicated region
      $region37: #{tpu_custom_call.1} parent=11 // pred_check
        %p267 = pneg %p204
      $region38: #{tpu_custom_call.1} parent=11 // pred_check_branch
        %269 = sbr.rel (%p267) target = $region40
      $region39: #{tpu_custom_call.1} parent=11 // pred_region
        _
      $region40: #{tpu_custom_call.1} parent=11 // pred_fallthru
        _
    $region12: #{tpu_custom_call.1} parent=5 // pred_fallthru
      _
    %p270 = scmp.lt.s32.totalorder %s14, 2
    // Predicated region
    $region41: #{tpu_custom_call.1} parent=5 // pred_check
      %p271 = pneg %p270
    $region42: #{tpu_custom_call.1} parent=5 // pred_check_branch
      %273 = sbr.rel (%p271) target = $region44
    $region43: #{tpu_custom_call.1} parent=5 // pred_region
      // Predicated region
      $region45: #{tpu_custom_call.1} parent=43 // pred_check
        %p274 = pneg %p46
      $region46: #{tpu_custom_call.1} parent=43 // pred_check_branch
        %276 = sbr.rel (%p274) target = $region48
      $region47: #{tpu_custom_call.1} parent=43 // pred_region
        %p277 = scmp.lt.s32.totalorder %s21, 1
        %s278 = scalar_select %p277, %s21, 1
        %s279 = smul.addr %s278, 36
        %s280 = smul.addr %s279, 4
        %s281 = scalar_lea.vmem %s0, %s280
      $region48: #{tpu_custom_call.1} parent=43 // pred_fallthru
        _
    $region44: #{tpu_custom_call.1} parent=5 // pred_fallthru
      _
    %p282 = scmp.le.s32.totalorder 1, %s14
    %p283 = scmp.lt.s32.totalorder %s14, 3
    %p284 = pnand %p282, %p283
    %p285 = pneg %p284
    // Predicated region
    $region49: #{tpu_custom_call.1} parent=5 // pred_check
      _
    $region50: #{tpu_custom_call.1} parent=5 // pred_check_branch
      %287 = sbr.rel (%p284) target = $region52
    $region51: #{tpu_custom_call.1} parent=5 // pred_region
      %s288 = ssub.s32 %s14, 1
      %p289 = scmp.lt.s32.totalorder %s23, 1
      %s290 = scalar_select %p289, %s23, 1
      %s291 = smul.addr %s290, 36
      %s292 = smul.addr %s291, 4
      %s293 = scalar_lea.vmem %s0, %s292
      %p294 = pneg %p52
      %p295 = pneg %p49
      %p296 = pneg %p73
      %p297 = pneg %p70
      %p298 = pneg %p94
      %p299 = pneg %p91
      %p300 = scmp.lt.s32.totalorder %s24, 0
      %s301 = scalar_select %p300, %s24, 0
      %s302 = smul.addr %s301, 2
      %s303 = scalar_lea.vmem %s3, %s302
      %p304 = pneg %p120
      %p305 = pneg %p117
      %p306 = pneg %p141
      %p307 = pneg %p138
      %p308 = pneg %p162
      %p309 = pneg %p159
      %p310 = pneg %p183
      %p311 = pneg %p180
      %p312 = pneg %p204
      %p313 = pneg %p201
      %p314 = pneg %p230
      %p315 = pneg %p227
      %p316 = scmp.lt.s32.totalorder %s23, 1
      %s317 = scalar_select %p316, %s23, 1
      %s318 = smul.addr %s317, 32
      %s319 = smul.addr %s318, 8
      %s320 = scalar_lea.vmem %s8, %s319
      %p321 = scmp.lt.s32.totalorder %s23, 1
      %s322 = scalar_select %p321, %s23, 1
      %s323 = smul.addr %s322, 36
      %s324 = smul.addr %s323, 4
      %s325 = scalar_lea.vmem %s0, %s324
      %p326 = scmp.lt.s32.totalorder %s24, 0
      %s327 = scalar_select %p326, %s24, 0
      %s328 = smul.addr %s327, 2
      %s329 = scalar_lea.vmem %s3, %s328
      %p330 = scmp.lt.s32.totalorder %s23, 1
      %s331 = scalar_select %p330, %s23, 1
      %s332 = smul.addr %s331, 32
      %s333 = smul.addr %s332, 8
      %s334 = scalar_lea.vmem %s8, %s333
      %s336 = smul.u32 %s24, 256
      %p337 = scmp.eq.s32.totalorder %s24, 0
      // Predicated region
      $region53: #{tpu_custom_call.1} parent=51 // pred_check
        %p338 = pneg %p337
      $region54: #{tpu_custom_call.1} parent=51 // pred_check_branch
        %340 = sbr.rel (%p338) target = $region56
      $region55: #{tpu_custom_call.1} parent=51 // pred_region
        %v341 = vlaneseq
        %vm342 = vcmp.ge.s32.totalorder %v341, 0
        %vm343 = vcmp.lt.s32.totalorder %v341, 256
        %vm344 = vmand %vm342, %vm343
        %345 = vst.msk [vmem:[#allocation2] sm:$0x3] %vm344, 0.0
      $region56: #{tpu_custom_call.1} parent=51 // pred_fallthru
        _
      %s346 = sshra.s32 %s336, 3
      %s347 = sand.u32 %s336, 7
      %s348 = smul.addr %s346, 4
      %s349 = scalar_lea.vmem %s325, %s348
      %v350 = vld [vmem:[%s349] sm:$0xf]
      %v351 = vld [vmem:[%s349 + $0x4] sm:$0xf]
      %v352 = vld [vmem:[%s349 + $0x8] sm:$0xf]
      %v353 = vld [vmem:[%s349 + $0xc] sm:$0xf]
      %v354 = vld [vmem:[%s349 + $0x10] sm:$0xf]
      %v355 = vld [vmem:[%s349 + $0x14] sm:$0xf]
      %v356 = vld [vmem:[%s349 + $0x18] sm:$0xf]
      %v357 = vld [vmem:[%s349 + $0x1c] sm:$0xf]
      %v358 = vld [vmem:[%s349 + $0x20] sm:$0xf]
      %v359 = vld [vmem:[%s349 + $0x24] sm:$0xf]
      %v360 = vld [vmem:[%s349 + $0x28] sm:$0xf]
      %v361 = vld [vmem:[%s349 + $0x2c] sm:$0xf]
      %v362 = vld [vmem:[%s349 + $0x30] sm:$0xf]
      %v363 = vld [vmem:[%s349 + $0x34] sm:$0xf]
      %v364 = vld [vmem:[%s349 + $0x38] sm:$0xf]
      %v365 = vld [vmem:[%s349 + $0x3c] sm:$0xf]
      %v366 = vld [vmem:[%s349 + $0x40] sm:$0xf]
      %v367 = vld [vmem:[%s349 + $0x44] sm:$0xf]
      %v368 = vld [vmem:[%s349 + $0x48] sm:$0xf]
      %v369 = vld [vmem:[%s349 + $0x4c] sm:$0xf]
      %v370 = vld [vmem:[%s349 + $0x50] sm:$0xf]
      %v371 = vld [vmem:[%s349 + $0x54] sm:$0xf]
      %v372 = vld [vmem:[%s349 + $0x58] sm:$0xf]
      %v373 = vld [vmem:[%s349 + $0x5c] sm:$0xf]
      %v374 = vld [vmem:[%s349 + $0x60] sm:$0xf]
      %v375 = vld [vmem:[%s349 + $0x64] sm:$0xf]
      %v376 = vld [vmem:[%s349 + $0x68] sm:$0xf]
      %v377 = vld [vmem:[%s349 + $0x6c] sm:$0xf]
      %v378 = vld [vmem:[%s349 + $0x70] sm:$0xf]
      %v379 = vld [vmem:[%s349 + $0x74] sm:$0xf]
      %v380 = vld [vmem:[%s349 + $0x78] sm:$0xf]
      %v381 = vld [vmem:[%s349 + $0x7c] sm:$0xf]
      %v382 = vld [vmem:[%s1] sm:$0xf]
      %v383 = vld [vmem:[%s1 + $0x4] sm:$0x3]
      %s384 = sadd.s32 %s336, 16
      %s385 = sshra.s32 %s384, 3
      %s386 = sand.u32 %s384, 7
      %s387 = smul.addr %s385, 4
      %s388 = scalar_lea.vmem %s325, %s387
      %v389 = vld [vmem:[%s388] sm:$0xf]
      %v390 = vld [vmem:[%s388 + $0x4] sm:$0xf]
      %v391 = vld [vmem:[%s388 + $0x8] sm:$0xf]
      %v392 = vld [vmem:[%s388 + $0xc] sm:$0xf]
      %v393 = vld [vmem:[%s388 + $0x10] sm:$0xf]
      %v394 = vld [vmem:[%s388 + $0x14] sm:$0xf]
      %v395 = vld [vmem:[%s388 + $0x18] sm:$0xf]
      %v396 = vld [vmem:[%s388 + $0x1c] sm:$0xf]
      %v397 = vld [vmem:[%s388 + $0x20] sm:$0xf]
      %v398 = vld [vmem:[%s388 + $0x24] sm:$0xf]
      %v399 = vld [vmem:[%s388 + $0x28] sm:$0xf]
      %v400 = vld [vmem:[%s388 + $0x2c] sm:$0xf]
      %v401 = vld [vmem:[%s388 + $0x30] sm:$0xf]
      %v402 = vld [vmem:[%s388 + $0x34] sm:$0xf]
      %v403 = vld [vmem:[%s388 + $0x38] sm:$0xf]
      %v404 = vld [vmem:[%s388 + $0x3c] sm:$0xf]
      %v405 = vld [vmem:[%s388 + $0x40] sm:$0xf]
      %v406 = vld [vmem:[%s388 + $0x44] sm:$0xf]
      %v407 = vld [vmem:[%s388 + $0x48] sm:$0xf]
      %v408 = vld [vmem:[%s388 + $0x4c] sm:$0xf]
      %v409 = vld [vmem:[%s388 + $0x50] sm:$0xf]
      %v410 = vld [vmem:[%s388 + $0x54] sm:$0xf]
      %v411 = vld [vmem:[%s388 + $0x58] sm:$0xf]
      %v412 = vld [vmem:[%s388 + $0x5c] sm:$0xf]
      %v413 = vld [vmem:[%s388 + $0x60] sm:$0xf]
      %v414 = vld [vmem:[%s388 + $0x64] sm:$0xf]
      %v415 = vld [vmem:[%s388 + $0x68] sm:$0xf]
      %v416 = vld [vmem:[%s388 + $0x6c] sm:$0xf]
      %v417 = vld [vmem:[%s388 + $0x70] sm:$0xf]
      %v418 = vld [vmem:[%s388 + $0x74] sm:$0xf]
      %v419 = vld [vmem:[%s388 + $0x78] sm:$0xf]
      %v420 = vld [vmem:[%s388 + $0x7c] sm:$0xf]
      %s421 = scalar_lea.vmem %s1, 8
      %v422 = vld [vmem:[%s421] sm:$0xf]
      %v423 = vld [vmem:[%s421 + $0x4] sm:$0x3]
      %v456 = vunpack.c.l.b16 %v389
      %v457 = vunpack.c.l.b16 %v390
      %v458 = vunpack.c.l.b16 %v391
      %v459 = vunpack.c.l.b16 %v392
      %v460 = vunpack.c.l.b16 %v393
      %v461 = vunpack.c.l.b16 %v394
      %v462 = vunpack.c.l.b16 %v395
      %v463 = vunpack.c.l.b16 %v396
      %v464 = vunpack.c.l.b16 %v397
      %v465 = vunpack.c.l.b16 %v398
      %v466 = vunpack.c.l.b16 %v399
      %v467 = vunpack.c.l.b16 %v400
      %v468 = vunpack.c.l.b16 %v401
      %v469 = vunpack.c.l.b16 %v402
      %v470 = vunpack.c.l.b16 %v403
      %v471 = vunpack.c.l.b16 %v404
      %v472 = vunpack.c.l.b16 %v405
      %v473 = vunpack.c.l.b16 %v406
      %v474 = vunpack.c.l.b16 %v407
      %v475 = vunpack.c.l.b16 %v408
      %v476 = vunpack.c.l.b16 %v409
      %v477 = vunpack.c.l.b16 %v410
      %v478 = vunpack.c.l.b16 %v411
      %v479 = vunpack.c.l.b16 %v412
      %v480 = vunpack.c.l.b16 %v413
      %v481 = vunpack.c.l.b16 %v414
      %v482 = vunpack.c.l.b16 %v415
      %v483 = vunpack.c.l.b16 %v416
      %v484 = vunpack.c.l.b16 %v417
      %v485 = vunpack.c.l.b16 %v418
      %v486 = vunpack.c.l.b16 %v419
      %v487 = vunpack.c.l.b16 %v420
      %v488 = vpack.c.b16 %v457, %v456
      %v489 = vpack.c.b16 %v459, %v458
      %v490 = vpack.c.b16 %v461, %v460
      %v491 = vpack.c.b16 %v463, %v462
      %v492 = vpack.c.b16 %v465, %v464
      %v493 = vpack.c.b16 %v467, %v466
      %v494 = vpack.c.b16 %v469, %v468
      %v495 = vpack.c.b16 %v471, %v470
      %v496 = vpack.c.b16 %v473, %v472
      %v497 = vpack.c.b16 %v475, %v474
      %v498 = vpack.c.b16 %v477, %v476
      %v499 = vpack.c.b16 %v479, %v478
      %v500 = vpack.c.b16 %v481, %v480
      %v501 = vpack.c.b16 %v483, %v482
      %v502 = vpack.c.b16 %v485, %v484
      %v503 = vpack.c.b16 %v487, %v486
      %v506 = vunpack.c.l.b16 %v422
      %v507 = vunpack.c.l.b16 %v423
      %v508 = vpack.c.b16 %v507, %v506
      %vm509 = vcmask 97280
      %v511 = vsel %vm509, %v488, 0
      %v514 = vsel %vm509, %v489, 0
      %v517 = vsel %vm509, %v490, 0
      %v520 = vsel %vm509, %v491, 0
      %v523 = vsel %vm509, %v492, 0
      %v526 = vsel %vm509, %v493, 0
      %v529 = vsel %vm509, %v494, 0
      %v532 = vsel %vm509, %v495, 0
      %v535 = vsel %vm509, %v496, 0
      %v538 = vsel %vm509, %v497, 0
      %v541 = vsel %vm509, %v498, 0
      %v544 = vsel %vm509, %v499, 0
      %v547 = vsel %vm509, %v500, 0
      %v550 = vsel %vm509, %v501, 0
      %v553 = vsel %vm509, %v502, 0
      %v556 = vsel %vm509, %v503, 0
      %vm558 = vcmask 1045504
      %v560 = vsel %vm558, %v508, 0
      %562 = vmatprep.subr.bf16.mxu0 0
      %563 = vmatpush1.bf16.msra.mxu0 %v560
      %564 = vmatprep.subr.bf16.mxu0 0
      %565 = vmatpush1.bf16.msra.mxu0 0
      %566 = vmatprep.subr.bf16.mxu0 0
      %567 = vmatpush1.bf16.msra.mxu0 0
      %568 = vmatprep.subr.bf16.mxu0 0
      %569 = vmatpush1.bf16.msra.mxu0 0
      %570 = vmatprep.subr.bf16.mxu0 0
      %571 = vmatpush1.bf16.msra.mxu0 0
      %572 = vmatprep.subr.bf16.mxu0 0
      %573 = vmatpush1.bf16.msra.mxu0 0
      %574 = vmatprep.subr.bf16.mxu0 0
      %575 = vmatpush1.bf16.msra.mxu0 0
      %576 = vmatprep.subr.bf16.mxu0 0
      %577 = vmatpush1.bf16.msra.mxu0 0
      %578 = vmatprep.subr.bf16.mxu0 0
      %579 = vmatpush1.bf16.msra.mxu0 0
      %580 = vmatprep.subr.bf16.mxu0 0
      %581 = vmatpush1.bf16.msra.mxu0 0
      %582 = vmatprep.subr.bf16.mxu0 0
      %583 = vmatpush1.bf16.msra.mxu0 0
      %584 = vmatprep.subr.bf16.mxu0 0
      %585 = vmatpush1.bf16.msra.mxu0 0
      %586 = vmatprep.subr.bf16.mxu0 0
      %587 = vmatpush1.bf16.msra.mxu0 0
      %588 = vmatprep.subr.bf16.mxu0 0
      %589 = vmatpush1.bf16.msra.mxu0 0
      %590 = vmatprep.subr.bf16.mxu0 0
      %591 = vmatpush1.bf16.msra.mxu0 0
      %592 = vmatprep.subr.bf16.mxu0 0
      %593 = vmatpush1.bf16.msra.mxu0 0
      %594 = vmatprep.mubr.bf16.mxu0 0
      %595 = vmatmul.mubr.bf16.gmra.mrb[0].mxu0 %v511
      %v596 = vpop.f32.mrb[0].mxu0
      %v597 = vadd.f32 0.0, %v596
      %v598 = vpop.f32.mrb[0].mxu0
      %v599 = vpop.f32.mrb[0].mxu0
      %v600 = vadd.f32 0.0, %v599
      %v601 = vpop.f32.mrb[0].mxu0
      %602 = vmatprep.mubr.bf16.mxu0 0
      %603 = vmatmul.mubr.bf16.gmra.mrb[0].mxu0 %v514
      %v604 = vpop.f32.mrb[0].mxu0
      %v605 = vadd.f32 0.0, %v604
      %v606 = vpop.f32.mrb[0].mxu0
      %v607 = vpop.f32.mrb[0].mxu0
      %v608 = vadd.f32 0.0, %v607
      %v609 = vpop.f32.mrb[0].mxu0
      %610 = vmatprep.mubr.bf16.mxu0 0
      %611 = vmatmul.mubr.bf16.gmra.mrb[0].mxu0 %v517
      %v612 = vpop.f32.mrb[0].mxu0
      %v613 = vadd.f32 0.0, %v612
      %v614 = vpop.f32.mrb[0].mxu0
      %v615 = vpop.f32.mrb[0].mxu0
      %v616 = vadd.f32 0.0, %v615
      %v617 = vpop.f32.mrb[0].mxu0
      %618 = vmatprep.mubr.bf16.mxu0 0
      %619 = vmatmul.mubr.bf16.gmra.mrb[0].mxu0 %v520
      %v620 = vpop.f32.mrb[0].mxu0
      %v621 = vadd.f32 0.0, %v620
      %v622 = vpop.f32.mrb[0].mxu0
      %v623 = vpop.f32.mrb[0].mxu0
      %v624 = vadd.f32 0.0, %v623
      %v625 = vpop.f32.mrb[0].mxu0
      %626 = vmatprep.mubr.bf16.mxu0 0
      %627 = vmatmul.mubr.bf16.gmra.mrb[0].mxu0 %v523
      %v628 = vpop.f32.mrb[0].mxu0
      %v629 = vadd.f32 0.0, %v628
      %v630 = vpop.f32.mrb[0].mxu0
      %v631 = vpop.f32.mrb[0].mxu0
      %v632 = vadd.f32 0.0, %v631
      %v633 = vpop.f32.mrb[0].mxu0
      %634 = vmatprep.mubr.bf16.mxu0 0
      %635 = vmatmul.mubr.bf16.gmra.mrb[0].mxu0 %v526
      %v636 = vpop.f32.mrb[0].mxu0
      %v637 = vadd.f32 0.0, %v636
      %v638 = vpop.f32.mrb[0].mxu0
      %v639 = vpop.f32.mrb[0].mxu0
      %v640 = vadd.f32 0.0, %v639
      %v641 = vpop.f32.mrb[0].mxu0
      %642 = vmatprep.mubr.bf16.mxu0 0
      %643 = vmatmul.mubr.bf16.gmra.mrb[0].mxu0 %v529
      %v644 = vpop.f32.mrb[0].mxu0
      %v645 = vadd.f32 0.0, %v644
      %v646 = vpop.f32.mrb[0].mxu0
      %v647 = vpop.f32.mrb[0].mxu0
      %v648 = vadd.f32 0.0, %v647
      %v649 = vpop.f32.mrb[0].mxu0
      %650 = vmatprep.mubr.bf16.mxu0 0
      %651 = vmatmul.mubr.bf16.gmra.mrb[0].mxu0 %v532
      %v652 = vpop.f32.mrb[0].mxu0
      %v653 = vadd.f32 0.0, %v652
      %v654 = vpop.f32.mrb[0].mxu0
      %v655 = vpop.f32.mrb[0].mxu0
      %v656 = vadd.f32 0.0, %v655
      %v657 = vpop.f32.mrb[0].mxu0
      %658 = vmatprep.mubr.bf16.mxu0 0
      %659 = vmatmul.mubr.bf16.gmra.mrb[0].mxu0 %v535
      %v660 = vpop.f32.mrb[0].mxu0
      %v661 = vadd.f32 0.0, %v660
      %v662 = vpop.f32.mrb[0].mxu0
      %v663 = vpop.f32.mrb[0].mxu0
      %v664 = vadd.f32 0.0, %v663
      %v665 = vpop.f32.mrb[0].mxu0
      %666 = vmatprep.mubr.bf16.mxu0 0
      %667 = vmatmul.mubr.bf16.gmra.mrb[0].mxu0 %v538
      %v668 = vpop.f32.mrb[0].mxu0
      %v669 = vadd.f32 0.0, %v668
      %v670 = vpop.f32.mrb[0].mxu0
      %v671 = vpop.f32.mrb[0].mxu0
      %v672 = vadd.f32 0.0, %v671
      %v673 = vpop.f32.mrb[0].mxu0
      %674 = vmatprep.mubr.bf16.mxu0 0
      %675 = vmatmul.mubr.bf16.gmra.mrb[0].mxu0 %v541
      %v676 = vpop.f32.mrb[0].mxu0
      %v677 = vadd.f32 0.0, %v676
      %v678 = vpop.f32.mrb[0].mxu0
      %v679 = vpop.f32.mrb[0].mxu0
      %v680 = vadd.f32 0.0, %v679
      %v681 = vpop.f32.mrb[0].mxu0
      %682 = vmatprep.mubr.bf16.mxu0 0
      %683 = vmatmul.mubr.bf16.gmra.mrb[0].mxu0 %v544
      %v684 = vpop.f32.mrb[0].mxu0
      %v685 = vadd.f32 0.0, %v684
      %v686 = vpop.f32.mrb[0].mxu0
      %v687 = vpop.f32.mrb[0].mxu0
      %v688 = vadd.f32 0.0, %v687
      %v689 = vpop.f32.mrb[0].mxu0
      %690 = vmatprep.mubr.bf16.mxu0 0
      %691 = vmatmul.mubr.bf16.gmra.mrb[0].mxu0 %v547
      %v692 = vpop.f32.mrb[0].mxu0
      %v693 = vadd.f32 0.0, %v692
      %v694 = vpop.f32.mrb[0].mxu0
      %v695 = vpop.f32.mrb[0].mxu0
      %v696 = vadd.f32 0.0, %v695
      %v697 = vpop.f32.mrb[0].mxu0
      %698 = vmatprep.mubr.bf16.mxu0 0
      %699 = vmatmul.mubr.bf16.gmra.mrb[0].mxu0 %v550
      %v700 = vpop.f32.mrb[0].mxu0
      %v701 = vadd.f32 0.0, %v700
      %v702 = vpop.f32.mrb[0].mxu0
      %v703 = vpop.f32.mrb[0].mxu0
      %v704 = vadd.f32 0.0, %v703
      %v705 = vpop.f32.mrb[0].mxu0
      %706 = vmatprep.mubr.bf16.mxu0 0
      %707 = vmatmul.mubr.bf16.gmra.mrb[0].mxu0 %v553
      %v708 = vpop.f32.mrb[0].mxu0
      %v709 = vadd.f32 0.0, %v708
      %v710 = vpop.f32.mrb[0].mxu0
      %v711 = vpop.f32.mrb[0].mxu0
      %v712 = vadd.f32 0.0, %v711
      %v713 = vpop.f32.mrb[0].mxu0
      %714 = vmatprep.mubr.bf16.mxu0 0
      %715 = vmatmul.mubr.bf16.gmra.mrb[0].mxu0 %v556
      %v716 = vpop.f32.mrb[0].mxu0
      %v717 = vadd.f32 0.0, %v716
      %v718 = vpop.f32.mrb[0].mxu0
      %v719 = vpop.f32.mrb[0].mxu0
      %v720 = vadd.f32 0.0, %v719
      %v721 = vpop.f32.mrb[0].mxu0
      %722 = vdwg.mxu0
      %v755 = vunpack.c.l.b16 %v350
      %v756 = vunpack.c.l.b16 %v351
      %v757 = vunpack.c.l.b16 %v352
      %v758 = vunpack.c.l.b16 %v353
      %v759 = vunpack.c.l.b16 %v354
      %v760 = vunpack.c.l.b16 %v355
      %v761 = vunpack.c.l.b16 %v356
      %v762 = vunpack.c.l.b16 %v357
      %v763 = vunpack.c.l.b16 %v358
      %v764 = vunpack.c.l.b16 %v359
      %v765 = vunpack.c.l.b16 %v360
      %v766 = vunpack.c.l.b16 %v361
      %v767 = vunpack.c.l.b16 %v362
      %v768 = vunpack.c.l.b16 %v363
      %v769 = vunpack.c.l.b16 %v364
      %v770 = vunpack.c.l.b16 %v365
      %v771 = vunpack.c.l.b16 %v366
      %v772 = vunpack.c.l.b16 %v367
      %v773 = vunpack.c.l.b16 %v368
      %v774 = vunpack.c.l.b16 %v369
      %v775 = vunpack.c.l.b16 %v370
      %v776 = vunpack.c.l.b16 %v371
      %v777 = vunpack.c.l.b16 %v372
      %v778 = vunpack.c.l.b16 %v373
      %v779 = vunpack.c.l.b16 %v374
      %v780 = vunpack.c.l.b16 %v375
      %v781 = vunpack.c.l.b16 %v376
      %v782 = vunpack.c.l.b16 %v377
      %v783 = vunpack.c.l.b16 %v378
      %v784 = vunpack.c.l.b16 %v379
      %v785 = vunpack.c.l.b16 %v380
      %v786 = vunpack.c.l.b16 %v381
      %v787 = vpack.c.b16 %v756, %v755
      %v788 = vpack.c.b16 %v758, %v757
      %v789 = vpack.c.b16 %v760, %v759
      %v790 = vpack.c.b16 %v762, %v761
      %v791 = vpack.c.b16 %v764, %v763
      %v792 = vpack.c.b16 %v766, %v765
      %v793 = vpack.c.b16 %v768, %v767
      %v794 = vpack.c.b16 %v770, %v769
      %v795 = vpack.c.b16 %v772, %v771
      %v796 = vpack.c.b16 %v774, %v773
      %v797 = vpack.c.b16 %v776, %v775
      %v798 = vpack.c.b16 %v778, %v777
      %v799 = vpack.c.b16 %v780, %v779
      %v800 = vpack.c.b16 %v782, %v781
      %v801 = vpack.c.b16 %v784, %v783
      %v802 = vpack.c.b16 %v786, %v785
      %v805 = vunpack.c.l.b16 %v382
      %v806 = vunpack.c.l.b16 %v383
      %v807 = vpack.c.b16 %v806, %v805
      %v809 = vsel %vm509, %v787, 0
      %v812 = vsel %vm509, %v788, 0
      %v815 = vsel %vm509, %v789, 0
      %v818 = vsel %vm509, %v790, 0
      %v821 = vsel %vm509, %v791, 0
      %v824 = vsel %vm509, %v792, 0
      %v827 = vsel %vm509, %v793, 0
      %v830 = vsel %vm509, %v794, 0
      %v833 = vsel %vm509, %v795, 0
      %v836 = vsel %vm509, %v796, 0
      %v839 = vsel %vm509, %v797, 0
      %v842 = vsel %vm509, %v798, 0
      %v845 = vsel %vm509, %v799, 0
      %v848 = vsel %vm509, %v800, 0
      %v851 = vsel %vm509, %v801, 0
      %v854 = vsel %vm509, %v802, 0
      %v857 = vsel %vm558, %v807, 0
      %859 = vmatprep.subr.bf16.mxu0 0
      %860 = vmatpush1.bf16.msra.mxu0 %v857
      %861 = vmatprep.subr.bf16.mxu0 0
      %862 = vmatpush1.bf16.msra.mxu0 0
      %863 = vmatprep.subr.bf16.mxu0 0
      %864 = vmatpush1.bf16.msra.mxu0 0
      %865 = vmatprep.subr.bf16.mxu0 0
      %866 = vmatpush1.bf16.msra.mxu0 0
      %867 = vmatprep.subr.bf16.mxu0 0
      %868 = vmatpush1.bf16.msra.mxu0 0
      %869 = vmatprep.subr.bf16.mxu0 0
      %870 = vmatpush1.bf16.msra.mxu0 0
      %871 = vmatprep.subr.bf16.mxu0 0
      %872 = vmatpush1.bf16.msra.mxu0 0
      %873 = vmatprep.subr.bf16.mxu0 0
      %874 = vmatpush1.bf16.msra.mxu0 0
      %875 = vmatprep.subr.bf16.mxu0 0
      %876 = vmatpush1.bf16.msra.mxu0 0
      %877 = vmatprep.subr.bf16.mxu0 0
      %878 = vmatpush1.bf16.msra.mxu0 0
      %879 = vmatprep.subr.bf16.mxu0 0
      %880 = vmatpush1.bf16.msra.mxu0 0
      %881 = vmatprep.subr.bf16.mxu0 0
      %882 = vmatpush1.bf16.msra.mxu0 0
      %883 = vmatprep.subr.bf16.mxu0 0
      %884 = vmatpush1.bf16.msra.mxu0 0
      %885 = vmatprep.subr.bf16.mxu0 0
      %886 = vmatpush1.bf16.msra.mxu0 0
      %887 = vmatprep.subr.bf16.mxu0 0
      %888 = vmatpush1.bf16.msra.mxu0 0
      %889 = vmatprep.subr.bf16.mxu0 0
      %890 = vmatpush1.bf16.msra.mxu0 0
      %891 = vmatprep.mubr.bf16.mxu0 0
      %892 = vmatmul.mubr.bf16.gmra.mrb[0].mxu0 %v809
      %v893 = vpop.f32.mrb[0].mxu0
      %v894 = vadd.f32 %v597, %v893
      %v895 = vpop.f32.mrb[0].mxu0
      %v896 = vpop.f32.mrb[0].mxu0
      %v897 = vadd.f32 %v600, %v896
      %v898 = vpop.f32.mrb[0].mxu0
      %899 = vmatprep.mubr.bf16.mxu0 0
      %900 = vmatmul.mubr.bf16.gmra.mrb[0].mxu0 %v812
      %v901 = vpop.f32.mrb[0].mxu0
      %v902 = vadd.f32 %v605, %v901
      %v903 = vpop.f32.mrb[0].mxu0
      %v904 = vpop.f32.mrb[0].mxu0
      %v905 = vadd.f32 %v608, %v904
      %v906 = vpop.f32.mrb[0].mxu0
      %907 = vmatprep.mubr.bf16.mxu0 0
      %908 = vmatmul.mubr.bf16.gmra.mrb[0].mxu0 %v815
      %v909 = vpop.f32.mrb[0].mxu0
      %v910 = vadd.f32 %v613, %v909
      %v911 = vpop.f32.mrb[0].mxu0
      %v912 = vpop.f32.mrb[0].mxu0
      %v913 = vadd.f32 %v616, %v912
      %v914 = vpop.f32.mrb[0].mxu0
      %915 = vmatprep.mubr.bf16.mxu0 0
      %916 = vmatmul.mubr.bf16.gmra.mrb[0].mxu0 %v818
      %v917 = vpop.f32.mrb[0].mxu0
      %v918 = vadd.f32 %v621, %v917
      %v919 = vpop.f32.mrb[0].mxu0
      %v920 = vpop.f32.mrb[0].mxu0
      %v921 = vadd.f32 %v624, %v920
      %v922 = vpop.f32.mrb[0].mxu0
      %923 = vmatprep.mubr.bf16.mxu0 0
      %924 = vmatmul.mubr.bf16.gmra.mrb[0].mxu0 %v821
      %v925 = vpop.f32.mrb[0].mxu0
      %v926 = vadd.f32 %v629, %v925
      %v927 = vpop.f32.mrb[0].mxu0
      %v928 = vpop.f32.mrb[0].mxu0
      %v929 = vadd.f32 %v632, %v928
      %v930 = vpop.f32.mrb[0].mxu0
      %931 = vmatprep.mubr.bf16.mxu0 0
      %932 = vmatmul.mubr.bf16.gmra.mrb[0].mxu0 %v824
      %v933 = vpop.f32.mrb[0].mxu0
      %v934 = vadd.f32 %v637, %v933
      %v935 = vpop.f32.mrb[0].mxu0
      %v936 = vpop.f32.mrb[0].mxu0
      %v937 = vadd.f32 %v640, %v936
      %v938 = vpop.f32.mrb[0].mxu0
      %939 = vmatprep.mubr.bf16.mxu0 0
      %940 = vmatmul.mubr.bf16.gmra.mrb[0].mxu0 %v827
      %v941 = vpop.f32.mrb[0].mxu0
      %v942 = vadd.f32 %v645, %v941
      %v943 = vpop.f32.mrb[0].mxu0
      %v944 = vpop.f32.mrb[0].mxu0
      %v945 = vadd.f32 %v648, %v944
      %v946 = vpop.f32.mrb[0].mxu0
      %947 = vmatprep.mubr.bf16.mxu0 0
      %948 = vmatmul.mubr.bf16.gmra.mrb[0].mxu0 %v830
      %v949 = vpop.f32.mrb[0].mxu0
      %v950 = vadd.f32 %v653, %v949
      %v951 = vpop.f32.mrb[0].mxu0
      %v952 = vpop.f32.mrb[0].mxu0
      %v953 = vadd.f32 %v656, %v952
      %v954 = vpop.f32.mrb[0].mxu0
      %955 = vmatprep.mubr.bf16.mxu0 0
      %956 = vmatmul.mubr.bf16.gmra.mrb[0].mxu0 %v833
      %v957 = vpop.f32.mrb[0].mxu0
      %v958 = vadd.f32 %v661, %v957
      %v959 = vpop.f32.mrb[0].mxu0
      %v960 = vpop.f32.mrb[0].mxu0
      %v961 = vadd.f32 %v664, %v960
      %v962 = vpop.f32.mrb[0].mxu0
      %963 = vmatprep.mubr.bf16.mxu0 0
      %964 = vmatmul.mubr.bf16.gmra.mrb[0].mxu0 %v836
      %v965 = vpop.f32.mrb[0].mxu0
      %v966 = vadd.f32 %v669, %v965
      %v967 = vpop.f32.mrb[0].mxu0
      %v968 = vpop.f32.mrb[0].mxu0
      %v969 = vadd.f32 %v672, %v968
      %v970 = vpop.f32.mrb[0].mxu0
      %971 = vmatprep.mubr.bf16.mxu0 0
      %972 = vmatmul.mubr.bf16.gmra.mrb[0].mxu0 %v839
      %v973 = vpop.f32.mrb[0].mxu0
      %v974 = vadd.f32 %v677, %v973
      %v975 = vpop.f32.mrb[0].mxu0
      %v976 = vpop.f32.mrb[0].mxu0
      %v977 = vadd.f32 %v680, %v976
      %v978 = vpop.f32.mrb[0].mxu0
      %979 = vmatprep.mubr.bf16.mxu0 0
      %980 = vmatmul.mubr.bf16.gmra.mrb[0].mxu0 %v842
      %v981 = vpop.f32.mrb[0].mxu0
      %v982 = vadd.f32 %v685, %v981
      %v983 = vpop.f32.mrb[0].mxu0
      %v984 = vpop.f32.mrb[0].mxu0
      %v985 = vadd.f32 %v688, %v984
      %v986 = vpop.f32.mrb[0].mxu0
      %987 = vmatprep.mubr.bf16.mxu0 0
      %988 = vmatmul.mubr.bf16.gmra.mrb[0].mxu0 %v845
      %v989 = vpop.f32.mrb[0].mxu0
      %v990 = vadd.f32 %v693, %v989
      %v991 = vpop.f32.mrb[0].mxu0
      %v992 = vpop.f32.mrb[0].mxu0
      %v993 = vadd.f32 %v696, %v992
      %v994 = vpop.f32.mrb[0].mxu0
      %995 = vmatprep.mubr.bf16.mxu0 0
      %996 = vmatmul.mubr.bf16.gmra.mrb[0].mxu0 %v848
      %v997 = vpop.f32.mrb[0].mxu0
      %v998 = vadd.f32 %v701, %v997
      %v999 = vpop.f32.mrb[0].mxu0
      %v1000 = vpop.f32.mrb[0].mxu0
      %v1001 = vadd.f32 %v704, %v1000
      %v1002 = vpop.f32.mrb[0].mxu0
      %1003 = vmatprep.mubr.bf16.mxu0 0
      %1004 = vmatmul.mubr.bf16.gmra.mrb[0].mxu0 %v851
      %v1005 = vpop.f32.mrb[0].mxu0
      %v1006 = vadd.f32 %v709, %v1005
      %v1007 = vpop.f32.mrb[0].mxu0
      %v1008 = vpop.f32.mrb[0].mxu0
      %v1009 = vadd.f32 %v712, %v1008
      %v1010 = vpop.f32.mrb[0].mxu0
      %1011 = vmatprep.mubr.bf16.mxu0 0
      %1012 = vmatmul.mubr.bf16.gmra.mrb[0].mxu0 %v854
      %v1013 = vpop.f32.mrb[0].mxu0
      %v1014 = vadd.f32 %v717, %v1013
      %v1015 = vpop.f32.mrb[0].mxu0
      %v1016 = vpop.f32.mrb[0].mxu0
      %v1017 = vadd.f32 %v720, %v1016
      %v1018 = vpop.f32.mrb[0].mxu0
      %1019 = vdwg.mxu0
      %s1020 = sadd.s32 %s336, 32
      %s1021 = sshra.s32 %s1020, 3
      %s1022 = sand.u32 %s1020, 7
      %s1023 = smul.addr %s1021, 4
      %s1024 = scalar_lea.vmem %s325, %s1023
      %v1025 = vld [vmem:[%s1024] sm:$0xf]
      %v1026 = vld [vmem:[%s1024 + $0x4] sm:$0xf]
      %v1027 = vld [vmem:[%s1024 + $0x8] sm:$0xf]
      %v1028 = vld [vmem:[%s1024 + $0xc] sm:$0xf]
      %v1029 = vld [vmem:[%s1024 + $0x10] sm:$0xf]
      %v1030 = vld [vmem:[%s1024 + $0x14] sm:$0xf]
      %v1031 = vld [vmem:[%s1024 + $0x18] sm:$0xf]
      %v1032 = vld [vmem:[%s1024 + $0x1c] sm:$0xf]
      %v1033 = vld [vmem:[%s1024 + $0x20] sm:$0xf]
      %v1034 = vld [vmem:[%s1024 + $0x24] sm:$0xf]
      %v1035 = vld [vmem:[%s1024 + $0x28] sm:$0xf]
      %v1036 = vld [vmem:[%s1024 + $0x2c] sm:$0xf]
      %v1037 = vld [vmem:[%s1024 + $0x30] sm:$0xf]
      %v1038 = vld [vmem:[%s1024 + $0x34] sm:$0xf]
      %v1039 = vld [vmem:[%s1024 + $0x38] sm:$0xf]
      %v1040 = vld [vmem:[%s1024 + $0x3c] sm:$0xf]
      %v1041 = vld [vmem:[%s1024 + $0x40] sm:$0xf]
      %v1042 = vld [vmem:[%s1024 + $0x44] sm:$0xf]
      %v1043 = vld [vmem:[%s1024 + $0x48] sm:$0xf]
      %v1044 = vld [vmem:[%s1024 + $0x4c] sm:$0xf]
      %v1045 = vld [vmem:[%s1024 + $0x50] sm:$0xf]
      %v1046 = vld [vmem:[%s1024 + $0x54] sm:$0xf]
      %v1047 = vld [vmem:[%s1024 + $0x58] sm:$0xf]
      %v1048 = vld [vmem:[%s1024 + $0x5c] sm:$0xf]
      %v1049 = vld [vmem:[%s1024 + $0x60] sm:$0xf]
      %v1050 = vld [vmem:[%s1024 + $0x64] sm:$0xf]
      %v1051 = vld [vmem:[%s1024 + $0x68] sm:$0xf]
      %v1052 = vld [vmem:[%s1024 + $0x6c] sm:$0xf]
      %v1053 = vld [vmem:[%s1024 + $0x70] sm:$0xf]
      %v1054 = vld [vmem:[%s1024 + $0x74] sm:$0xf]
      %v1055 = vld [vmem:[%s1024 + $0x78] sm:$0xf]
      %v1056 = vld [vmem:[%s1024 + $0x7c] sm:$0xf]
      %s1057 = scalar_lea.vmem %s1, 16
      %v1058 = vld [vmem:[%s1057] sm:$0xf]
      %v1059 = vld [vmem:[%s1057 + $0x4] sm:$0x3]
      %v1092 = vunpack.c.l.b16 %v1025
      %v1093 = vunpack.c.l.b16 %v1026
      %v1094 = vunpack.c.l.b16 %v1027
      %v1095 = vunpack.c.l.b16 %v1028
      %v1096 = vunpack.c.l.b16 %v1029
      %v1097 = vunpack.c.l.b16 %v1030
      %v1098 = vunpack.c.l.b16 %v1031
      %v1099 = vunpack.c.l.b16 %v1032
      %v1100 = vunpack.c.l.b16 %v1033
      %v1101 = vunpack.c.l.b16 %v1034
      %v1102 = vunpack.c.l.b16 %v1035
      %v1103 = vunpack.c.l.b16 %v1036
      %v1104 = vunpack.c.l.b16 %v1037
      %v1105 = vunpack.c.l.b16 %v1038
      %v1106 = vunpack.c.l.b16 %v1039
      %v1107 = vunpack.c.l.b16 %v1040
      %v1108 = vunpack.c.l.b16 %v1041
      %v1109 = vunpack.c.l.b16 %v1042
      %v1110 = vunpack.c.l.b16 %v1043
      %v1111 = vunpack.c.l.b16 %v1044
      %v1112 = vunpack.c.l.b16 %v1045
      %v1113 = vunpack.c.l.b16 %v1046
      %v1114 = vunpack.c.l.b16 %v1047
      %v1115 = vunpack.c.l.b16 %v1048
      %v1116 = vunpack.c.l.b16 %v1049
      %v1117 = vunpack.c.l.b16 %v1050
      %v1118 = vunpack.c.l.b16 %v1051
      %v1119 = vunpack.c.l.b16 %v1052
      %v1120 = vunpack.c.l.b16 %v1053
      %v1121 = vunpack.c.l.b16 %v1054
      %v1122 = vunpack.c.l.b16 %v1055
      %v1123 = vunpack.c.l.b16 %v1056
      %v1124 = vpack.c.b16 %v1093, %v1092
      %v1125 = vpack.c.b16 %v1095, %v1094
      %v1126 = vpack.c.b16 %v1097, %v1096
      %v1127 = vpack.c.b16 %v1099, %v1098
      %v1128 = vpack.c.b16 %v1101, %v1100
      %v1129 = vpack.c.b16 %v1103, %v1102
      %v1130 = vpack.c.b16 %v1105, %v1104
      %v1131 = vpack.c.b16 %v1107, %v1106
      %v1132 = vpack.c.b16 %v1109, %v1108
      %v1133 = vpack.c.b16 %v1111, %v1110
      %v1134 = vpack.c.b16 %v1113, %v1112
      %v1135 = vpack.c.b16 %v1115, %v1114
      %v1136 = vpack.c.b16 %v1117, %v1116
      %v1137 = vpack.c.b16 %v1119, %v1118
      %v1138 = vpack.c.b16 %v1121, %v1120
      %v1139 = vpack.c.b16 %v1123, %v1122
      %v1142 = vunpack.c.l.b16 %v1058
      %v1143 = vunpack.c.l.b16 %v1059
      %v1144 = vpack.c.b16 %v1143, %v1142
      %v1146 = vsel %vm509, %v1124, 0
      %v1149 = vsel %vm509, %v1125, 0
      %v1152 = vsel %vm509, %v1126, 0
      %v1155 = vsel %vm509, %v1127, 0
      %v1158 = vsel %vm509, %v1128, 0
      %v1161 = vsel %vm509, %v1129, 0
      %v1164 = vsel %vm509, %v1130, 0
      %v1167 = vsel %vm509, %v1131, 0
      %v1170 = vsel %vm509, %v1132, 0
      %v1173 = vsel %vm509, %v1133, 0
      %v1176 = vsel %vm509, %v1134, 0
      %v1179 = vsel %vm509, %v1135, 0
      %v1182 = vsel %vm509, %v1136, 0
      %v1185 = vsel %vm509, %v1137, 0
      %v1188 = vsel %vm509, %v1138, 0
      %v1191 = vsel %vm509, %v1139, 0
      %v1194 = vsel %vm558, %v1144, 0
      %1196 = vmatprep.subr.bf16.mxu0 0
      %1197 = vmatpush1.bf16.msra.mxu0 %v1194
      %1198 = vmatprep.subr.bf16.mxu0 0
      %1199 = vmatpush1.bf16.msra.mxu0 0
      %1200 = vmatprep.subr.bf16.mxu0 0
      %1201 = vmatpush1.bf16.msra.mxu0 0
      %1202 = vmatprep.subr.bf16.mxu0 0
      %1203 = vmatpush1.bf16.msra.mxu0 0
      %1204 = vmatprep.subr.bf16.mxu0 0
      %1205 = vmatpush1.bf16.msra.mxu0 0
      %1206 = vmatprep.subr.bf16.mxu0 0
      %1207 = vmatpush1.bf16.msra.mxu0 0
      %1208 = vmatprep.subr.bf16.mxu0 0
      %1209 = vmatpush1.bf16.msra.mxu0 0
      %1210 = vmatprep.subr.bf16.mxu0 0
      %1211 = vmatpush1.bf16.msra.mxu0 0
      %1212 = vmatprep.subr.bf16.mxu0 0
      %1213 = vmatpush1.bf16.msra.mxu0 0
      %1214 = vmatprep.subr.bf16.mxu0 0
      %1215 = vmatpush1.bf16.msra.mxu0 0
      %1216 = vmatprep.subr.bf16.mxu0 0
      %1217 = vmatpush1.bf16.msra.mxu0 0
      %1218 = vmatprep.subr.bf16.mxu0 0
      %1219 = vmatpush1.bf16.msra.mxu0 0
      %1220 = vmatprep.subr.bf16.mxu0 0
      %1221 = vmatpush1.bf16.msra.mxu0 0
      %1222 = vmatprep.subr.bf16.mxu0 0
      %1223 = vmatpush1.bf16.msra.mxu0 0
      %1224 = vmatprep.subr.bf16.mxu0 0
      %1225 = vmatpush1.bf16.msra.mxu0 0
      %1226 = vmatprep.subr.bf16.mxu0 0
      %1227 = vmatpush1.bf16.msra.mxu0 0
      %1228 = vmatprep.mubr.bf16.mxu0 0
      %1229 = vmatmul.mubr.bf16.gmra.mrb[0].mxu0 %v1146
      %v1230 = vpop.f32.mrb[0].mxu0
      %v1231 = vadd.f32 0.0, %v1230
      %v1232 = vpop.f32.mrb[0].mxu0
      %v1233 = vpop.f32.mrb[0].mxu0
      %v1234 = vadd.f32 0.0, %v1233
      %v1235 = vpop.f32.mrb[0].mxu0
      %1236 = vmatprep.mubr.bf16.mxu0 0
      %1237 = vmatmul.mubr.bf16.gmra.mrb[0].mxu0 %v1149
      %v1238 = vpop.f32.mrb[0].mxu0
      %v1239 = vadd.f32 0.0, %v1238
      %v1240 = vpop.f32.mrb[0].mxu0
      %v1241 = vpop.f32.mrb[0].mxu0
      %v1242 = vadd.f32 0.0, %v1241
      %v1243 = vpop.f32.mrb[0].mxu0
      %1244 = vmatprep.mubr.bf16.mxu0 0
      %1245 = vmatmul.mubr.bf16.gmra.mrb[0].mxu0 %v1152
      %v1246 = vpop.f32.mrb[0].mxu0
      %v1247 = vadd.f32 0.0, %v1246
      %v1248 = vpop.f32.mrb[0].mxu0
      %v1249 = vpop.f32.mrb[0].mxu0
      %v1250 = vadd.f32 0.0, %v1249
      %v1251 = vpop.f32.mrb[0].mxu0
      %1252 = vmatprep.mubr.bf16.mxu0 0
      %1253 = vmatmul.mubr.bf16.gmra.mrb[0].mxu0 %v1155
      %v1254 = vpop.f32.mrb[0].mxu0
      %v1255 = vadd.f32 0.0, %v1254
      %v1256 = vpop.f32.mrb[0].mxu0
      %v1257 = vpop.f32.mrb[0].mxu0
      %v1258 = vadd.f32 0.0, %v1257
      %v1259 = vpop.f32.mrb[0].mxu0
      %1260 = vmatprep.mubr.bf16.mxu0 0
      %1261 = vmatmul.mubr.bf16.gmra.mrb[0].mxu0 %v1158
      %v1262 = vpop.f32.mrb[0].mxu0
      %v1263 = vadd.f32 0.0, %v1262
      %v1264 = vpop.f32.mrb[0].mxu0
      %v1265 = vpop.f32.mrb[0].mxu0
      %v1266 = vadd.f32 0.0, %v1265
      %v1267 = vpop.f32.mrb[0].mxu0
      %1268 = vmatprep.mubr.bf16.mxu0 0
      %1269 = vmatmul.mubr.bf16.gmra.mrb[0].mxu0 %v1161
      %v1270 = vpop.f32.mrb[0].mxu0
      %v1271 = vadd.f32 0.0, %v1270
      %v1272 = vpop.f32.mrb[0].mxu0
      %v1273 = vpop.f32.mrb[0].mxu0
      %v1274 = vadd.f32 0.0, %v1273
      %v1275 = vpop.f32.mrb[0].mxu0
      %1276 = vmatprep.mubr.bf16.mxu0 0
      %1277 = vmatmul.mubr.bf16.gmra.mrb[0].mxu0 %v1164
      %v1278 = vpop.f32.mrb[0].mxu0
      %v1279 = vadd.f32 0.0, %v1278
      %v1280 = vpop.f32.mrb[0].mxu0
      %v1281 = vpop.f32.mrb[0].mxu0
      %v1282 = vadd.f32 0.0, %v1281
      %v1283 = vpop.f32.mrb[0].mxu0
      %1284 = vmatprep.mubr.bf16.mxu0 0
      %1285 = vmatmul.mubr.bf16.gmra.mrb[0].mxu0 %v1167
      %v1286 = vpop.f32.mrb[0].mxu0
      %v1287 = vadd.f32 0.0, %v1286
      %v1288 = vpop.f32.mrb[0].mxu0
      %v1289 = vpop.f32.mrb[0].mxu0
      %v1290 = vadd.f32 0.0, %v1289
      %v1291 = vpop.f32.mrb[0].mxu0
      %1292 = vmatprep.mubr.bf16.mxu0 0
      %1293 = vmatmul.mubr.bf16.gmra.mrb[0].mxu0 %v1170
      %v1294 = vpop.f32.mrb[0].mxu0
      %v1295 = vadd.f32 0.0, %v1294
      %v1296 = vpop.f32.mrb[0].mxu0
      %v1297 = vpop.f32.mrb[0].mxu0
      %v1298 = vadd.f32 0.0, %v1297
      %v1299 = vpop.f32.mrb[0].mxu0
      %1300 = vmatprep.mubr.bf16.mxu0 0
      %1301 = vmatmul.mubr.bf16.gmra.mrb[0].mxu0 %v1173
      %v1302 = vpop.f32.mrb[0].mxu0
      %v1303 = vadd.f32 0.0, %v1302
      %v1304 = vpop.f32.mrb[0].mxu0
      %v1305 = vpop.f32.mrb[0].mxu0
      %v1306 = vadd.f32 0.0, %v1305
      %v1307 = vpop.f32.mrb[0].mxu0
      %1308 = vmatprep.mubr.bf16.mxu0 0
      %1309 = vmatmul.mubr.bf16.gmra.mrb[0].mxu0 %v1176
      %v1310 = vpop.f32.mrb[0].mxu0
      %v1311 = vadd.f32 0.0, %v1310
      %v1312 = vpop.f32.mrb[0].mxu0
      %v1313 = vpop.f32.mrb[0].mxu0
      %v1314 = vadd.f32 0.0, %v1313
      %v1315 = vpop.f32.mrb[0].mxu0
      %1316 = vmatprep.mubr.bf16.mxu0 0
      %1317 = vmatmul.mubr.bf16.gmra.mrb[0].mxu0 %v1179
      %v1318 = vpop.f32.mrb[0].mxu0
      %v1319 = vadd.f32 0.0, %v1318
      %v1320 = vpop.f32.mrb[0].mxu0
      %v1321 = vpop.f32.mrb[0].mxu0
      %v1322 = vadd.f32 0.0, %v1321
      %v1323 = vpop.f32.mrb[0].mxu0
      %1324 = vmatprep.mubr.bf16.mxu0 0
      %1325 = vmatmul.mubr.bf16.gmra.mrb[0].mxu0 %v1182
      %v1326 = vpop.f32.mrb[0].mxu0
      %v1327 = vadd.f32 0.0, %v1326
      %v1328 = vpop.f32.mrb[0].mxu0
      %v1329 = vpop.f32.mrb[0].mxu0
      %v1330 = vadd.f32 0.0, %v1329
      %v1331 = vpop.f32.mrb[0].mxu0
      %1332 = vmatprep.mubr.bf16.mxu0 0
      %1333 = vmatmul.mubr.bf16.gmra.mrb[0].mxu0 %v1185
      %v1334 = vpop.f32.mrb[0].mxu0
      %v1335 = vadd.f32 0.0, %v1334
      %v1336 = vpop.f32.mrb[0].mxu0
      %v1337 = vpop.f32.mrb[0].mxu0
      %v1338 = vadd.f32 0.0, %v1337
      %v1339 = vpop.f32.mrb[0].mxu0
      %1340 = vmatprep.mubr.bf16.mxu0 0
      %1341 = vmatmul.mubr.bf16.gmra.mrb[0].mxu0 %v1188
      %v1342 = vpop.f32.mrb[0].mxu0
      %v1343 = vadd.f32 0.0, %v1342
      %v1344 = vpop.f32.mrb[0].mxu0
      %v1345 = vpop.f32.mrb[0].mxu0
      %v1346 = vadd.f32 0.0, %v1345
      %v1347 = vpop.f32.mrb[0].mxu0
      %1348 = vmatprep.mubr.bf16.mxu0 0
      %1349 = vmatmul.mubr.bf16.gmra.mrb[0].mxu0 %v1191
      %v1350 = vpop.f32.mrb[0].mxu0
      %v1351 = vadd.f32 0.0, %v1350
      %v1352 = vpop.f32.mrb[0].mxu0
      %v1353 = vpop.f32.mrb[0].mxu0
      %v1354 = vadd.f32 0.0, %v1353
      %v1355 = vpop.f32.mrb[0].mxu0
      %1356 = vdwg.mxu0
      %v1357 = vadd.f32 %v894, %v1231
      %v1358 = vadd.f32 %v897, %v1234
      %v1359 = vadd.f32 %v902, %v1239
      %v1360 = vadd.f32 %v905, %v1242
      %v1361 = vadd.f32 %v910, %v1247
      %v1362 = vadd.f32 %v913, %v1250
      %v1363 = vadd.f32 %v918, %v1255
      %v1364 = vadd.f32 %v921, %v1258
      %v1365 = vadd.f32 %v926, %v1263
      %v1366 = vadd.f32 %v929, %v1266
      %v1367 = vadd.f32 %v934, %v1271
      %v1368 = vadd.f32 %v937, %v1274
      %v1369 = vadd.f32 %v942, %v1279
      %v1370 = vadd.f32 %v945, %v1282
      %v1371 = vadd.f32 %v950, %v1287
      %v1372 = vadd.f32 %v953, %v1290
      %v1373 = vadd.f32 %v958, %v1295
      %v1374 = vadd.f32 %v961, %v1298
      %v1375 = vadd.f32 %v966, %v1303
      %v1376 = vadd.f32 %v969, %v1306
      %v1377 = vadd.f32 %v974, %v1311
      %v1378 = vadd.f32 %v977, %v1314
      %v1379 = vadd.f32 %v982, %v1319
      %v1380 = vadd.f32 %v985, %v1322
      %v1381 = vadd.f32 %v990, %v1327
      %v1382 = vadd.f32 %v993, %v1330
      %v1383 = vadd.f32 %v998, %v1335
      %v1384 = vadd.f32 %v1001, %v1338
      %v1385 = vadd.f32 %v1006, %v1343
      %v1386 = vadd.f32 %v1009, %v1346
      %v1387 = vadd.f32 %v1014, %v1351
      %v1388 = vadd.f32 %v1017, %v1354
      %v1389 = vld [vmem:[%s2] sm:$0x1]
      %v1391 = vlaneseq
      %v1392 = vshrl.u32 %v1391, 7
      %v1393 = vsub.s32 0, %v1392
      %v1394 = vrot.slane %v1389, %v1393
      %v1396 = vadd.f32 %v1357, %v1394
      %v1397 = vadd.f32 %v1358, %v1394
      %v1398 = vadd.f32 %v1359, %v1394
      %v1399 = vadd.f32 %v1360, %v1394
      %v1400 = vadd.f32 %v1361, %v1394
      %v1401 = vadd.f32 %v1362, %v1394
      %v1402 = vadd.f32 %v1363, %v1394
      %v1403 = vadd.f32 %v1364, %v1394
      %v1404 = vadd.f32 %v1365, %v1394
      %v1405 = vadd.f32 %v1366, %v1394
      %v1406 = vadd.f32 %v1367, %v1394
      %v1407 = vadd.f32 %v1368, %v1394
      %v1408 = vadd.f32 %v1369, %v1394
      %v1409 = vadd.f32 %v1370, %v1394
      %v1410 = vadd.f32 %v1371, %v1394
      %v1411 = vadd.f32 %v1372, %v1394
      %v1412 = vadd.f32 %v1373, %v1394
      %v1413 = vadd.f32 %v1374, %v1394
      %v1414 = vadd.f32 %v1375, %v1394
      %v1415 = vadd.f32 %v1376, %v1394
      %v1416 = vadd.f32 %v1377, %v1394
      %v1417 = vadd.f32 %v1378, %v1394
      %v1418 = vadd.f32 %v1379, %v1394
      %v1419 = vadd.f32 %v1380, %v1394
      %v1420 = vadd.f32 %v1381, %v1394
      %v1421 = vadd.f32 %v1382, %v1394
      %v1422 = vadd.f32 %v1383, %v1394
      %v1423 = vadd.f32 %v1384, %v1394
      %v1424 = vadd.f32 %v1385, %v1394
      %v1425 = vadd.f32 %v1386, %v1394
      %v1426 = vadd.f32 %v1387, %v1394
      %v1427 = vadd.f32 %v1388, %v1394
      %v1428 = vmul.f32 %v1396, %v1396
      %v1429 = vmul.f32 %v1397, %v1397
      %v1430 = vmul.f32 %v1398, %v1398
      %v1431 = vmul.f32 %v1399, %v1399
      %v1432 = vmul.f32 %v1400, %v1400
      %v1433 = vmul.f32 %v1401, %v1401
      %v1434 = vmul.f32 %v1402, %v1402
      %v1435 = vmul.f32 %v1403, %v1403
      %v1436 = vmul.f32 %v1404, %v1404
      %v1437 = vmul.f32 %v1405, %v1405
      %v1438 = vmul.f32 %v1406, %v1406
      %v1439 = vmul.f32 %v1407, %v1407
      %v1440 = vmul.f32 %v1408, %v1408
      %v1441 = vmul.f32 %v1409, %v1409
      %v1442 = vmul.f32 %v1410, %v1410
      %v1443 = vmul.f32 %v1411, %v1411
      %v1444 = vmul.f32 %v1412, %v1412
      %v1445 = vmul.f32 %v1413, %v1413
      %v1446 = vmul.f32 %v1414, %v1414
      %v1447 = vmul.f32 %v1415, %v1415
      %v1448 = vmul.f32 %v1416, %v1416
      %v1449 = vmul.f32 %v1417, %v1417
      %v1450 = vmul.f32 %v1418, %v1418
      %v1451 = vmul.f32 %v1419, %v1419
      %v1452 = vmul.f32 %v1420, %v1420
      %v1453 = vmul.f32 %v1421, %v1421
      %v1454 = vmul.f32 %v1422, %v1422
      %v1455 = vmul.f32 %v1423, %v1423
      %v1456 = vmul.f32 %v1424, %v1424
      %v1457 = vmul.f32 %v1425, %v1425
      %v1458 = vmul.f32 %v1426, %v1426
      %v1459 = vmul.f32 %v1427, %v1427
      %v1460 = vld [vmem:[#allocation2] sm:$0x3]
      %v1461 = vld [vmem:[%s329] sm:$0x3]
      %v1463 = vlaneseq
      %v1464 = vshrl.u32 %v1463, 7
      %v1465 = vsub.s32 0, %v1464
      %v1466 = vrot.slane %v1461, %v1465
      %v1467 = vlaneseq
      %v1468 = vshrl.u32 %v1467, 7
      %v1469 = vsub.s32 1, %v1468
      %v1470 = vrot.slane %v1461, %v1469
      %1473 = vmatprep.subr.mxu0 %v1428
      %1474 = vmatpush1.msra.mxu0 %v1396
      %1475 = vmatprep.subr.mxu0 %v1429
      %1476 = vmatpush1.msra.mxu0 %v1397
      %1477 = vmatprep.subr.mxu0 %v1430
      %1478 = vmatpush1.msra.mxu0 %v1398
      %1479 = vmatprep.subr.mxu0 %v1431
      %1480 = vmatpush1.msra.mxu0 %v1399
      %1481 = vmatprep.subr.mxu0 %v1432
      %1482 = vmatpush1.msra.mxu0 %v1400
      %1483 = vmatprep.subr.mxu0 %v1433
      %1484 = vmatpush1.msra.mxu0 %v1401
      %1485 = vmatprep.subr.mxu0 %v1434
      %1486 = vmatpush1.msra.mxu0 %v1402
      %1487 = vmatprep.subr.mxu0 %v1435
      %1488 = vmatpush1.msra.mxu0 %v1403
      %1489 = vmatprep.subr.mxu0 %v1436
      %1490 = vmatpush1.msra.mxu0 %v1404
      %1491 = vmatprep.subr.mxu0 %v1437
      %1492 = vmatpush1.msra.mxu0 %v1405
      %1493 = vmatprep.subr.mxu0 %v1438
      %1494 = vmatpush1.msra.mxu0 %v1406
      %1495 = vmatprep.subr.mxu0 %v1439
      %1496 = vmatpush1.msra.mxu0 %v1407
      %1497 = vmatprep.subr.mxu0 %v1440
      %1498 = vmatpush1.msra.mxu0 %v1408
      %1499 = vmatprep.subr.mxu0 %v1441
      %1500 = vmatpush1.msra.mxu0 %v1409
      %1501 = vmatprep.subr.mxu0 %v1442
      %1502 = vmatpush1.msra.mxu0 %v1410
      %1503 = vmatprep.subr.mxu0 %v1443
      %1504 = vmatpush1.msra.mxu0 %v1411
      %1505 = vmatprep.subr.mxu0 %v1444
      %1506 = vmatpush1.msra.mxu0 %v1412
      %1507 = vmatprep.subr.mxu0 %v1445
      %1508 = vmatpush1.msra.mxu0 %v1413
      %1509 = vmatprep.subr.mxu0 %v1446
      %1510 = vmatpush1.msra.mxu0 %v1414
      %1511 = vmatprep.subr.mxu0 %v1447
      %1512 = vmatpush1.msra.mxu0 %v1415
      %1513 = vmatprep.subr.mxu0 %v1448
      %1514 = vmatpush1.msra.mxu0 %v1416
      %1515 = vmatprep.subr.mxu0 %v1449
      %1516 = vmatpush1.msra.mxu0 %v1417
      %1517 = vmatprep.subr.mxu0 %v1450
      %1518 = vmatpush1.msra.mxu0 %v1418
      %1519 = vmatprep.subr.mxu0 %v1451
      %1520 = vmatpush1.msra.mxu0 %v1419
      %1521 = vmatprep.subr.mxu0 %v1452
      %1522 = vmatpush1.msra.mxu0 %v1420
      %1523 = vmatprep.subr.mxu0 %v1453
      %1524 = vmatpush1.msra.mxu0 %v1421
      %1525 = vmatprep.subr.mxu0 %v1454
      %1526 = vmatpush1.msra.mxu0 %v1422
      %1527 = vmatprep.subr.mxu0 %v1455
      %1528 = vmatpush1.msra.mxu0 %v1423
      %1529 = vmatprep.subr.mxu0 %v1456
      %1530 = vmatpush1.msra.mxu0 %v1424
      %1531 = vmatprep.subr.mxu0 %v1457
      %1532 = vmatpush1.msra.mxu0 %v1425
      %1533 = vmatprep.subr.mxu0 %v1458
      %1534 = vmatpush1.msra.mxu0 %v1426
      %1535 = vmatprep.subr.mxu0 %v1459
      %1536 = vmatpush1.msra.mxu0 %v1427
      %1537 = vmatprep.mubr.f32.mxu0 %v1470
      %1538 = vmatmul.mubr.f32.gmra.mrb[0].mxu0 %v1466
      %v1539 = vpop.f32.mrb[0].mxu0
      %v1540 = vadd.f32 0.0, %v1539
      %v1541 = vpop.f32.mrb[0].mxu0
      %v1542 = vadd.f32 0.0, %v1541
      %1543 = vdwg.mxu0
      %v1546 = vcombine.low %v1540, %v1542
      %v1548 = vunpack.c.l.s4 1966171168
      %v1549 = vunpack.c.0.s8 %v1548
      %v1550 = vlaneseq
      %v1551 = vshrl.u32 %v1550, 7
      %v1552 = vsub.s32 %v1549, %v1551
      %v1553 = vrot.slane %v1546, %v1552
      %v1555 = vunpack.c.l.s4 1966171168
      %v1556 = vunpack.c.0.s8 %v1555
      %v1557 = vlaneseq
      %v1558 = vshrl.u32 %v1557, 7
      %v1559 = vsub.s32 %v1556, %v1558
      %v1560 = vrot.slane %v1553, %v1559
      %v1562 = vadd.f32 %v1460, %v1560
      %v1563 = vlaneseq
      %vm1564 = vcmp.ge.s32.totalorder %v1563, 0
      %vm1565 = vcmp.lt.s32.totalorder %v1563, 256
      %vm1566 = vmand %vm1564, %vm1565
      %1567 = vst.msk [vmem:[#allocation2] sm:$0x3] %vm1566, %v1562
      %s1568 = scalar_lea.vmem %s334, %s336
      %vm1569 = vcmask 261120
      %1570 = vst.msk [vmem:[%s1568] sm:$0xff] %vm1569, %v1396
      %1571 = vst.msk [vmem:[%s1568 + $0x8] sm:$0xff] %vm1569, %v1397
      %1572 = vst.msk [vmem:[%s1568 + $0x10] sm:$0xff] %vm1569, %v1398
      %1573 = vst.msk [vmem:[%s1568 + $0x18] sm:$0xff] %vm1569, %v1399
      %1574 = vst.msk [vmem:[%s1568 + $0x20] sm:$0xff] %vm1569, %v1400
      %1575 = vst.msk [vmem:[%s1568 + $0x28] sm:$0xff] %vm1569, %v1401
      %1576 = vst.msk [vmem:[%s1568 + $0x30] sm:$0xff] %vm1569, %v1402
      %1577 = vst.msk [vmem:[%s1568 + $0x38] sm:$0xff] %vm1569, %v1403
      %1578 = vst.msk [vmem:[%s1568 + $0x40] sm:$0xff] %vm1569, %v1404
      %1579 = vst.msk [vmem:[%s1568 + $0x48] sm:$0xff] %vm1569, %v1405
      %1580 = vst.msk [vmem:[%s1568 + $0x50] sm:$0xff] %vm1569, %v1406
      %1581 = vst.msk [vmem:[%s1568 + $0x58] sm:$0xff] %vm1569, %v1407
      %1582 = vst.msk [vmem:[%s1568 + $0x60] sm:$0xff] %vm1569, %v1408
      %1583 = vst.msk [vmem:[%s1568 + $0x68] sm:$0xff] %vm1569, %v1409
      %1584 = vst.msk [vmem:[%s1568 + $0x70] sm:$0xff] %vm1569, %v1410
      %1585 = vst.msk [vmem:[%s1568 + $0x78] sm:$0xff] %vm1569, %v1411
      %1586 = vst.msk [vmem:[%s1568 + $0x80] sm:$0xff] %vm1569, %v1412
      %1587 = vst.msk [vmem:[%s1568 + $0x88] sm:$0xff] %vm1569, %v1413
      %1588 = vst.msk [vmem:[%s1568 + $0x90] sm:$0xff] %vm1569, %v1414
      %1589 = vst.msk [vmem:[%s1568 + $0x98] sm:$0xff] %vm1569, %v1415
      %1590 = vst.msk [vmem:[%s1568 + $0xa0] sm:$0xff] %vm1569, %v1416
      %1591 = vst.msk [vmem:[%s1568 + $0xa8] sm:$0xff] %vm1569, %v1417
      %1592 = vst.msk [vmem:[%s1568 + $0xb0] sm:$0xff] %vm1569, %v1418
      %1593 = vst.msk [vmem:[%s1568 + $0xb8] sm:$0xff] %vm1569, %v1419
      %1594 = vst.msk [vmem:[%s1568 + $0xc0] sm:$0xff] %vm1569, %v1420
      %1595 = vst.msk [vmem:[%s1568 + $0xc8] sm:$0xff] %vm1569, %v1421
      %1596 = vst.msk [vmem:[%s1568 + $0xd0] sm:$0xff] %vm1569, %v1422
      %1597 = vst.msk [vmem:[%s1568 + $0xd8] sm:$0xff] %vm1569, %v1423
      %1598 = vst.msk [vmem:[%s1568 + $0xe0] sm:$0xff] %vm1569, %v1424
      %1599 = vst.msk [vmem:[%s1568 + $0xe8] sm:$0xff] %vm1569, %v1425
      %1600 = vst.msk [vmem:[%s1568 + $0xf0] sm:$0xff] %vm1569, %v1426
      %1601 = vst.msk [vmem:[%s1568 + $0xf8] sm:$0xff] %vm1569, %v1427
      // Predicated region
      $region57: #{tpu_custom_call.1} parent=51 // pred_check
        %p1602 = pneg %p337
      $region58: #{tpu_custom_call.1} parent=51 // pred_check_branch
        %1604 = sbr.rel (%p1602) target = $region60
      $region59: #{tpu_custom_call.1} parent=51 // pred_region
        %v1605 = vld [vmem:[#allocation2] sm:$0x1]
        %v1606 = vld [vmem:[#allocation2 + $0x1] sm:$0x1]
        %v1607 = vld [vmem:[%s4] sm:$0xff]
        %v1608 = vld [vmem:[%s4 + $0x8] sm:$0xff]
        %v1609 = vld [vmem:[%s4 + $0x10] sm:$0xff]
        %v1610 = vld [vmem:[%s4 + $0x18] sm:$0xff]
        %v1611 = vld [vmem:[%s4 + $0x20] sm:$0xff]
        %v1612 = vld [vmem:[%s4 + $0x28] sm:$0xff]
        %v1613 = vld [vmem:[%s4 + $0x30] sm:$0xff]
        %v1614 = vld [vmem:[%s4 + $0x38] sm:$0xff]
        %v1615 = vld [vmem:[%s4 + $0x40] sm:$0xff]
        %v1616 = vld [vmem:[%s4 + $0x48] sm:$0xff]
        %v1617 = vld [vmem:[%s4 + $0x50] sm:$0xff]
        %v1618 = vld [vmem:[%s4 + $0x58] sm:$0xff]
        %v1619 = vld [vmem:[%s4 + $0x60] sm:$0xff]
        %v1620 = vld [vmem:[%s4 + $0x68] sm:$0xff]
        %v1621 = vld [vmem:[%s4 + $0x70] sm:$0xff]
        %v1622 = vld [vmem:[%s4 + $0x78] sm:$0xff]
        %1623 = vmatprep.subr.mxu0 0.0
        %1624 = vmatpush1.msra.mxu0 %v1607
        %1625 = vmatprep.subr.mxu0 0.0
        %1626 = vmatpush1.msra.mxu0 %v1608
        %1627 = vmatprep.subr.mxu0 0.0
        %1628 = vmatpush1.msra.mxu0 %v1609
        %1629 = vmatprep.subr.mxu0 0.0
        %1630 = vmatpush1.msra.mxu0 %v1610
        %1631 = vmatprep.subr.mxu0 0.0
        %1632 = vmatpush1.msra.mxu0 %v1611
        %1633 = vmatprep.subr.mxu0 0.0
        %1634 = vmatpush1.msra.mxu0 %v1612
        %1635 = vmatprep.subr.mxu0 0.0
        %1636 = vmatpush1.msra.mxu0 %v1613
        %1637 = vmatprep.subr.mxu0 0.0
        %1638 = vmatpush1.msra.mxu0 %v1614
        %1639 = vmatprep.subr.mxu0 0.0
        %1640 = vmatpush1.msra.mxu0 %v1615
        %1641 = vmatprep.subr.mxu0 0.0
        %1642 = vmatpush1.msra.mxu0 %v1616
        %1643 = vmatprep.subr.mxu0 0.0
        %1644 = vmatpush1.msra.mxu0 %v1617
        %1645 = vmatprep.subr.mxu0 0.0
        %1646 = vmatpush1.msra.mxu0 %v1618
        %1647 = vmatprep.subr.mxu0 0.0
        %1648 = vmatpush1.msra.mxu0 %v1619
        %1649 = vmatprep.subr.mxu0 0.0
        %1650 = vmatpush1.msra.mxu0 %v1620
        %1651 = vmatprep.subr.mxu0 0.0
        %1652 = vmatpush1.msra.mxu0 %v1621
        %1653 = vmatprep.subr.mxu0 0.0
        %1654 = vmatpush1.msra.mxu0 %v1622
        %1655 = vmatprep.subr.mxu0 0.0
        %1656 = vmatpush1.msra.mxu0 0.0
        %1657 = vmatprep.subr.mxu0 0.0
        %1658 = vmatpush1.msra.mxu0 0.0
        %1659 = vmatprep.subr.mxu0 0.0
        %1660 = vmatpush1.msra.mxu0 0.0
        %1661 = vmatprep.subr.mxu0 0.0
        %1662 = vmatpush1.msra.mxu0 0.0
        %1663 = vmatprep.subr.mxu0 0.0
        %1664 = vmatpush1.msra.mxu0 0.0
        %1665 = vmatprep.subr.mxu0 0.0
        %1666 = vmatpush1.msra.mxu0 0.0
        %1667 = vmatprep.subr.mxu0 0.0
        %1668 = vmatpush1.msra.mxu0 0.0
        %1669 = vmatprep.subr.mxu0 0.0
        %1670 = vmatpush1.msra.mxu0 0.0
        %1671 = vmatprep.subr.mxu0 0.0
        %1672 = vmatpush1.msra.mxu0 0.0
        %1673 = vmatprep.subr.mxu0 0.0
        %1674 = vmatpush1.msra.mxu0 0.0
        %1675 = vmatprep.subr.mxu0 0.0
        %1676 = vmatpush1.msra.mxu0 0.0
        %1677 = vmatprep.subr.mxu0 0.0
        %1678 = vmatpush1.msra.mxu0 0.0
        %1679 = vmatprep.subr.mxu0 0.0
        %1680 = vmatpush1.msra.mxu0 0.0
        %1681 = vmatprep.subr.mxu0 0.0
        %1682 = vmatpush1.msra.mxu0 0.0
        %1683 = vmatprep.subr.mxu0 0.0
        %1684 = vmatpush1.msra.mxu0 0.0
        %1685 = vmatprep.subr.mxu0 0.0
        %1686 = vmatpush1.msra.mxu0 0.0
        %1687 = vmatprep.mubr.f32.mxu0 0.0
        %1688 = vmatmul.mubr.f32.gmra.mrb[0].mxu0 %v1605
        %v1689 = vpop.f32.mrb[0].mxu0
        %v1690 = vadd.f32 0.0, %v1689
        %v1691 = vpop.f32.mrb[0].mxu0
        %1692 = vdwg.mxu0
        %1693 = vmatprep.subr.mxu0 0.0
        %1694 = vmatpush1.msra.mxu0 %v1607
        %1695 = vmatprep.subr.mxu0 0.0
        %1696 = vmatpush1.msra.mxu0 %v1608
        %1697 = vmatprep.subr.mxu0 0.0
        %1698 = vmatpush1.msra.mxu0 %v1609
        %1699 = vmatprep.subr.mxu0 0.0
        %1700 = vmatpush1.msra.mxu0 %v1610
        %1701 = vmatprep.subr.mxu0 0.0
        %1702 = vmatpush1.msra.mxu0 %v1611
        %1703 = vmatprep.subr.mxu0 0.0
        %1704 = vmatpush1.msra.mxu0 %v1612
        %1705 = vmatprep.subr.mxu0 0.0
        %1706 = vmatpush1.msra.mxu0 %v1613
        %1707 = vmatprep.subr.mxu0 0.0
        %1708 = vmatpush1.msra.mxu0 %v1614
        %1709 = vmatprep.subr.mxu0 0.0
        %1710 = vmatpush1.msra.mxu0 %v1615
        %1711 = vmatprep.subr.mxu0 0.0
        %1712 = vmatpush1.msra.mxu0 %v1616
        %1713 = vmatprep.subr.mxu0 0.0
        %1714 = vmatpush1.msra.mxu0 %v1617
        %1715 = vmatprep.subr.mxu0 0.0
        %1716 = vmatpush1.msra.mxu0 %v1618
        %1717 = vmatprep.subr.mxu0 0.0
        %1718 = vmatpush1.msra.mxu0 %v1619
        %1719 = vmatprep.subr.mxu0 0.0
        %1720 = vmatpush1.msra.mxu0 %v1620
        %1721 = vmatprep.subr.mxu0 0.0
        %1722 = vmatpush1.msra.mxu0 %v1621
        %1723 = vmatprep.subr.mxu0 0.0
        %1724 = vmatpush1.msra.mxu0 %v1622
        %1725 = vmatprep.subr.mxu0 0.0
        %1726 = vmatpush1.msra.mxu0 0.0
        %1727 = vmatprep.subr.mxu0 0.0
        %1728 = vmatpush1.msra.mxu0 0.0
        %1729 = vmatprep.subr.mxu0 0.0
        %1730 = vmatpush1.msra.mxu0 0.0
        %1731 = vmatprep.subr.mxu0 0.0
        %1732 = vmatpush1.msra.mxu0 0.0
        %1733 = vmatprep.subr.mxu0 0.0
        %1734 = vmatpush1.msra.mxu0 0.0
        %1735 = vmatprep.subr.mxu0 0.0
        %1736 = vmatpush1.msra.mxu0 0.0
        %1737 = vmatprep.subr.mxu0 0.0
        %1738 = vmatpush1.msra.mxu0 0.0
        %1739 = vmatprep.subr.mxu0 0.0
        %1740 = vmatpush1.msra.mxu0 0.0
        %1741 = vmatprep.subr.mxu0 0.0
        %1742 = vmatpush1.msra.mxu0 0.0
        %1743 = vmatprep.subr.mxu0 0.0
        %1744 = vmatpush1.msra.mxu0 0.0
        %1745 = vmatprep.subr.mxu0 0.0
        %1746 = vmatpush1.msra.mxu0 0.0
        %1747 = vmatprep.subr.mxu0 0.0
        %1748 = vmatpush1.msra.mxu0 0.0
        %1749 = vmatprep.subr.mxu0 0.0
        %1750 = vmatpush1.msra.mxu0 0.0
        %1751 = vmatprep.subr.mxu0 0.0
        %1752 = vmatpush1.msra.mxu0 0.0
        %1753 = vmatprep.subr.mxu0 0.0
        %1754 = vmatpush1.msra.mxu0 0.0
        %1755 = vmatprep.subr.mxu0 0.0
        %1756 = vmatpush1.msra.mxu0 0.0
        %1757 = vmatprep.mubr.f32.mxu0 0.0
        %1758 = vmatmul.mubr.f32.gmra.mrb[0].mxu0 %v1606
        %v1759 = vpop.f32.mrb[0].mxu0
        %v1760 = vadd.f32 0.0, %v1759
        %v1761 = vpop.f32.mrb[0].mxu0
        %1762 = vdwg.mxu0
        %v1763 = vmul.f32 %v1690, 0.0025510204
        %v1764 = vmul.f32 %v1760, 0.0025510204
        %v1765 = vmul.f32 %v1763, %v1763
        %v1766 = vsub.f32 %v1764, %v1765
        %v1767 = vadd.f32 %v1766, 1e-05
        %v1768 = vrsqrt.pop %v1767
        %v1769 = vld [vmem:[%s5] sm:$0xff]
        %v1770 = vld [vmem:[%s5 + $0x8] sm:$0xff]
        %vm1771 = vcmask 130048
        %v1773 = vsel %vm1771, %v1763, 0
        %1775 = vmatprep.subr.mxu0 0.0
        %1776 = vmatpush1.msra.mxu0 %v1769
        %1777 = vmatprep.subr.mxu0 0.0
        %1778 = vmatpush1.msra.mxu0 %v1770
        %1779 = vmatprep.subr.mxu0 0.0
        %1780 = vmatpush1.msra.mxu0 0.0
        %1781 = vmatprep.subr.mxu0 0.0
        %1782 = vmatpush1.msra.mxu0 0.0
        %1783 = vmatprep.subr.mxu0 0.0
        %1784 = vmatpush1.msra.mxu0 0.0
        %1785 = vmatprep.subr.mxu0 0.0
        %1786 = vmatpush1.msra.mxu0 0.0
        %1787 = vmatprep.subr.mxu0 0.0
        %1788 = vmatpush1.msra.mxu0 0.0
        %1789 = vmatprep.subr.mxu0 0.0
        %1790 = vmatpush1.msra.mxu0 0.0
        %1791 = vmatprep.subr.mxu0 0.0
        %1792 = vmatpush1.msra.mxu0 0.0
        %1793 = vmatprep.subr.mxu0 0.0
        %1794 = vmatpush1.msra.mxu0 0.0
        %1795 = vmatprep.subr.mxu0 0.0
        %1796 = vmatpush1.msra.mxu0 0.0
        %1797 = vmatprep.subr.mxu0 0.0
        %1798 = vmatpush1.msra.mxu0 0.0
        %1799 = vmatprep.subr.mxu0 0.0
        %1800 = vmatpush1.msra.mxu0 0.0
        %1801 = vmatprep.subr.mxu0 0.0
        %1802 = vmatpush1.msra.mxu0 0.0
        %1803 = vmatprep.subr.mxu0 0.0
        %1804 = vmatpush1.msra.mxu0 0.0
        %1805 = vmatprep.subr.mxu0 0.0
        %1806 = vmatpush1.msra.mxu0 0.0
        %1807 = vmatprep.subr.mxu0 0.0
        %1808 = vmatpush1.msra.mxu0 0.0
        %1809 = vmatprep.subr.mxu0 0.0
        %1810 = vmatpush1.msra.mxu0 0.0
        %1811 = vmatprep.subr.mxu0 0.0
        %1812 = vmatpush1.msra.mxu0 0.0
        %1813 = vmatprep.subr.mxu0 0.0
        %1814 = vmatpush1.msra.mxu0 0.0
        %1815 = vmatprep.subr.mxu0 0.0
        %1816 = vmatpush1.msra.mxu0 0.0
        %1817 = vmatprep.subr.mxu0 0.0
        %1818 = vmatpush1.msra.mxu0 0.0
        %1819 = vmatprep.subr.mxu0 0.0
        %1820 = vmatpush1.msra.mxu0 0.0
        %1821 = vmatprep.subr.mxu0 0.0
        %1822 = vmatpush1.msra.mxu0 0.0
        %1823 = vmatprep.subr.mxu0 0.0
        %1824 = vmatpush1.msra.mxu0 0.0
        %1825 = vmatprep.subr.mxu0 0.0
        %1826 = vmatpush1.msra.mxu0 0.0
        %1827 = vmatprep.subr.mxu0 0.0
        %1828 = vmatpush1.msra.mxu0 0.0
        %1829 = vmatprep.subr.mxu0 0.0
        %1830 = vmatpush1.msra.mxu0 0.0
        %1831 = vmatprep.subr.mxu0 0.0
        %1832 = vmatpush1.msra.mxu0 0.0
        %1833 = vmatprep.subr.mxu0 0.0
        %1834 = vmatpush1.msra.mxu0 0.0
        %1835 = vmatprep.subr.mxu0 0.0
        %1836 = vmatpush1.msra.mxu0 0.0
        %1837 = vmatprep.subr.mxu0 0.0
        %1838 = vmatpush1.msra.mxu0 0.0
        %1839 = vmatprep.mubr.f32.mxu0 0.0
        %1840 = vmatmul.mubr.f32.gmra.mrb[0].mxu0 %v1773
        %v1841 = vpop.f32.mrb[0].mxu0
        %v1842 = vadd.f32 0.0, %v1841
        %v1843 = vpop.f32.mrb[0].mxu0
        %1844 = vdwg.mxu0
        %v1846 = vsel %vm1771, %v1768, 0
        %1848 = vmatprep.subr.mxu0 0.0
        %1849 = vmatpush1.msra.mxu0 %v1769
        %1850 = vmatprep.subr.mxu0 0.0
        %1851 = vmatpush1.msra.mxu0 %v1770
        %1852 = vmatprep.subr.mxu0 0.0
        %1853 = vmatpush1.msra.mxu0 0.0
        %1854 = vmatprep.subr.mxu0 0.0
        %1855 = vmatpush1.msra.mxu0 0.0
        %1856 = vmatprep.subr.mxu0 0.0
        %1857 = vmatpush1.msra.mxu0 0.0
        %1858 = vmatprep.subr.mxu0 0.0
        %1859 = vmatpush1.msra.mxu0 0.0
        %1860 = vmatprep.subr.mxu0 0.0
        %1861 = vmatpush1.msra.mxu0 0.0
        %1862 = vmatprep.subr.mxu0 0.0
        %1863 = vmatpush1.msra.mxu0 0.0
        %1864 = vmatprep.subr.mxu0 0.0
        %1865 = vmatpush1.msra.mxu0 0.0
        %1866 = vmatprep.subr.mxu0 0.0
        %1867 = vmatpush1.msra.mxu0 0.0
        %1868 = vmatprep.subr.mxu0 0.0
        %1869 = vmatpush1.msra.mxu0 0.0
        %1870 = vmatprep.subr.mxu0 0.0
        %1871 = vmatpush1.msra.mxu0 0.0
        %1872 = vmatprep.subr.mxu0 0.0
        %1873 = vmatpush1.msra.mxu0 0.0
        %1874 = vmatprep.subr.mxu0 0.0
        %1875 = vmatpush1.msra.mxu0 0.0
        %1876 = vmatprep.subr.mxu0 0.0
        %1877 = vmatpush1.msra.mxu0 0.0
        %1878 = vmatprep.subr.mxu0 0.0
        %1879 = vmatpush1.msra.mxu0 0.0
        %1880 = vmatprep.subr.mxu0 0.0
        %1881 = vmatpush1.msra.mxu0 0.0
        %1882 = vmatprep.subr.mxu0 0.0
        %1883 = vmatpush1.msra.mxu0 0.0
        %1884 = vmatprep.subr.mxu0 0.0
        %1885 = vmatpush1.msra.mxu0 0.0
        %1886 = vmatprep.subr.mxu0 0.0
        %1887 = vmatpush1.msra.mxu0 0.0
        %1888 = vmatprep.subr.mxu0 0.0
        %1889 = vmatpush1.msra.mxu0 0.0
        %1890 = vmatprep.subr.mxu0 0.0
        %1891 = vmatpush1.msra.mxu0 0.0
        %1892 = vmatprep.subr.mxu0 0.0
        %1893 = vmatpush1.msra.mxu0 0.0
        %1894 = vmatprep.subr.mxu0 0.0
        %1895 = vmatpush1.msra.mxu0 0.0
        %1896 = vmatprep.subr.mxu0 0.0
        %1897 = vmatpush1.msra.mxu0 0.0
        %1898 = vmatprep.subr.mxu0 0.0
        %1899 = vmatpush1.msra.mxu0 0.0
        %1900 = vmatprep.subr.mxu0 0.0
        %1901 = vmatpush1.msra.mxu0 0.0
        %1902 = vmatprep.subr.mxu0 0.0
        %1903 = vmatpush1.msra.mxu0 0.0
        %1904 = vmatprep.subr.mxu0 0.0
        %1905 = vmatpush1.msra.mxu0 0.0
        %1906 = vmatprep.subr.mxu0 0.0
        %1907 = vmatpush1.msra.mxu0 0.0
        %1908 = vmatprep.subr.mxu0 0.0
        %1909 = vmatpush1.msra.mxu0 0.0
        %1910 = vmatprep.subr.mxu0 0.0
        %1911 = vmatpush1.msra.mxu0 0.0
        %1912 = vmatprep.mubr.f32.mxu0 0.0
        %1913 = vmatmul.mubr.f32.gmra.mrb[0].mxu0 %v1846
        %v1914 = vpop.f32.mrb[0].mxu0
        %v1915 = vadd.f32 0.0, %v1914
        %v1916 = vpop.f32.mrb[0].mxu0
        %1917 = vdwg.mxu0
        %v1918 = vld [vmem:[%s6] sm:$0x1]
        %v1919 = vmul.f32 %v1915, %v1918
        %v1920 = vld [vmem:[%s7] sm:$0x1]
        %v1921 = vmul.f32 %v1842, %v1915
        %v1922 = vmul.f32 %v1921, %v1918
        %v1923 = vsub.f32 %v1920, %v1922
        %v1924 = vld [vmem:[%s334] sm:$0xff]
        %v1925 = vld [vmem:[%s334 + $0x8] sm:$0xff]
        %v1926 = vld [vmem:[%s334 + $0x10] sm:$0xff]
        %v1927 = vld [vmem:[%s334 + $0x18] sm:$0xff]
        %v1928 = vld [vmem:[%s334 + $0x20] sm:$0xff]
        %v1929 = vld [vmem:[%s334 + $0x28] sm:$0xff]
        %v1930 = vld [vmem:[%s334 + $0x30] sm:$0xff]
        %v1931 = vld [vmem:[%s334 + $0x38] sm:$0xff]
        %v1932 = vld [vmem:[%s334 + $0x40] sm:$0xff]
        %v1933 = vld [vmem:[%s334 + $0x48] sm:$0xff]
        %v1934 = vld [vmem:[%s334 + $0x50] sm:$0xff]
        %v1935 = vld [vmem:[%s334 + $0x58] sm:$0xff]
        %v1936 = vld [vmem:[%s334 + $0x60] sm:$0xff]
        %v1937 = vld [vmem:[%s334 + $0x68] sm:$0xff]
        %v1938 = vld [vmem:[%s334 + $0x70] sm:$0xff]
        %v1939 = vld [vmem:[%s334 + $0x78] sm:$0xff]
        %v1940 = vld [vmem:[%s334 + $0x80] sm:$0xff]
        %v1941 = vld [vmem:[%s334 + $0x88] sm:$0xff]
        %v1942 = vld [vmem:[%s334 + $0x90] sm:$0xff]
        %v1943 = vld [vmem:[%s334 + $0x98] sm:$0xff]
        %v1944 = vld [vmem:[%s334 + $0xa0] sm:$0xff]
        %v1945 = vld [vmem:[%s334 + $0xa8] sm:$0xff]
        %v1946 = vld [vmem:[%s334 + $0xb0] sm:$0xff]
        %v1947 = vld [vmem:[%s334 + $0xb8] sm:$0xff]
        %v1948 = vld [vmem:[%s334 + $0xc0] sm:$0xff]
        %v1949 = vld [vmem:[%s334 + $0xc8] sm:$0xff]
        %v1950 = vld [vmem:[%s334 + $0xd0] sm:$0xff]
        %v1951 = vld [vmem:[%s334 + $0xd8] sm:$0xff]
        %v1952 = vld [vmem:[%s334 + $0xe0] sm:$0xff]
        %v1953 = vld [vmem:[%s334 + $0xe8] sm:$0xff]
        %v1954 = vld [vmem:[%s334 + $0xf0] sm:$0xff]
        %v1955 = vld [vmem:[%s334 + $0xf8] sm:$0xff]
        %v1956 = vlaneseq
        %v1957 = vshrl.u32 %v1956, 7
        %v1958 = vsub.s32 0, %v1957
        %v1959 = vrot.slane %v1919, %v1958
        %v1960 = vmul.f32 %v1924, %v1959
        %v1961 = vmul.f32 %v1925, %v1959
        %v1962 = vmul.f32 %v1926, %v1959
        %v1963 = vmul.f32 %v1927, %v1959
        %v1964 = vmul.f32 %v1928, %v1959
        %v1965 = vmul.f32 %v1929, %v1959
        %v1966 = vmul.f32 %v1930, %v1959
        %v1967 = vmul.f32 %v1931, %v1959
        %v1968 = vmul.f32 %v1932, %v1959
        %v1969 = vmul.f32 %v1933, %v1959
        %v1970 = vmul.f32 %v1934, %v1959
        %v1971 = vmul.f32 %v1935, %v1959
        %v1972 = vmul.f32 %v1936, %v1959
        %v1973 = vmul.f32 %v1937, %v1959
        %v1974 = vmul.f32 %v1938, %v1959
        %v1975 = vmul.f32 %v1939, %v1959
        %v1976 = vmul.f32 %v1940, %v1959
        %v1977 = vmul.f32 %v1941, %v1959
        %v1978 = vmul.f32 %v1942, %v1959
        %v1979 = vmul.f32 %v1943, %v1959
        %v1980 = vmul.f32 %v1944, %v1959
        %v1981 = vmul.f32 %v1945, %v1959
        %v1982 = vmul.f32 %v1946, %v1959
        %v1983 = vmul.f32 %v1947, %v1959
        %v1984 = vmul.f32 %v1948, %v1959
        %v1985 = vmul.f32 %v1949, %v1959
        %v1986 = vmul.f32 %v1950, %v1959
        %v1987 = vmul.f32 %v1951, %v1959
        %v1988 = vmul.f32 %v1952, %v1959
        %v1989 = vmul.f32 %v1953, %v1959
        %v1990 = vmul.f32 %v1954, %v1959
        %v1991 = vmul.f32 %v1955, %v1959
        %v1993 = vlaneseq
        %v1994 = vshrl.u32 %v1993, 7
        %v1995 = vsub.s32 0, %v1994
        %v1996 = vrot.slane %v1923, %v1995
        %v1998 = vadd.f32 %v1960, %v1996
        %v1999 = vadd.f32 %v1961, %v1996
        %v2000 = vadd.f32 %v1962, %v1996
        %v2001 = vadd.f32 %v1963, %v1996
        %v2002 = vadd.f32 %v1964, %v1996
        %v2003 = vadd.f32 %v1965, %v1996
        %v2004 = vadd.f32 %v1966, %v1996
        %v2005 = vadd.f32 %v1967, %v1996
        %v2006 = vadd.f32 %v1968, %v1996
        %v2007 = vadd.f32 %v1969, %v1996
        %v2008 = vadd.f32 %v1970, %v1996
        %v2009 = vadd.f32 %v1971, %v1996
        %v2010 = vadd.f32 %v1972, %v1996
        %v2011 = vadd.f32 %v1973, %v1996
        %v2012 = vadd.f32 %v1974, %v1996
        %v2013 = vadd.f32 %v1975, %v1996
        %v2014 = vadd.f32 %v1976, %v1996
        %v2015 = vadd.f32 %v1977, %v1996
        %v2016 = vadd.f32 %v1978, %v1996
        %v2017 = vadd.f32 %v1979, %v1996
        %v2018 = vadd.f32 %v1980, %v1996
        %v2019 = vadd.f32 %v1981, %v1996
        %v2020 = vadd.f32 %v1982, %v1996
        %v2021 = vadd.f32 %v1983, %v1996
        %v2022 = vadd.f32 %v1984, %v1996
        %v2023 = vadd.f32 %v1985, %v1996
        %v2024 = vadd.f32 %v1986, %v1996
        %v2025 = vadd.f32 %v1987, %v1996
        %v2026 = vadd.f32 %v1988, %v1996
        %v2027 = vadd.f32 %v1989, %v1996
        %v2028 = vadd.f32 %v1990, %v1996
        %v2029 = vadd.f32 %v1991, %v1996
        %v2030 = vxor.u32 %v1998, 2147483648
        %v2031 = vxor.u32 %v1999, 2147483648
        %v2032 = vxor.u32 %v2000, 2147483648
        %v2033 = vxor.u32 %v2001, 2147483648
        %v2034 = vxor.u32 %v2002, 2147483648
        %v2035 = vxor.u32 %v2003, 2147483648
        %v2036 = vxor.u32 %v2004, 2147483648
        %v2037 = vxor.u32 %v2005, 2147483648
        %v2038 = vxor.u32 %v2006, 2147483648
        %v2039 = vxor.u32 %v2007, 2147483648
        %v2040 = vxor.u32 %v2008, 2147483648
        %v2041 = vxor.u32 %v2009, 2147483648
        %v2042 = vxor.u32 %v2010, 2147483648
        %v2043 = vxor.u32 %v2011, 2147483648
        %v2044 = vxor.u32 %v2012, 2147483648
        %v2045 = vxor.u32 %v2013, 2147483648
        %v2046 = vxor.u32 %v2014, 2147483648
        %v2047 = vxor.u32 %v2015, 2147483648
        %v2048 = vxor.u32 %v2016, 2147483648
        %v2049 = vxor.u32 %v2017, 2147483648
        %v2050 = vxor.u32 %v2018, 2147483648
        %v2051 = vxor.u32 %v2019, 2147483648
        %v2052 = vxor.u32 %v2020, 2147483648
        %v2053 = vxor.u32 %v2021, 2147483648
        %v2054 = vxor.u32 %v2022, 2147483648
        %v2055 = vxor.u32 %v2023, 2147483648
        %v2056 = vxor.u32 %v2024, 2147483648
        %v2057 = vxor.u32 %v2025, 2147483648
        %v2058 = vxor.u32 %v2026, 2147483648
        %v2059 = vxor.u32 %v2027, 2147483648
        %v2060 = vxor.u32 %v2028, 2147483648
        %v2061 = vxor.u32 %v2029, 2147483648
        %v2062 = vmul.f32 %v2030, 1.442695
        %v2063 = vpow.pop %v2062
        %v2064 = vmul.f32 %v2031, 1.442695
        %v2065 = vpow.pop %v2064
        %v2066 = vmul.f32 %v2032, 1.442695
        %v2067 = vpow.pop %v2066
        %v2068 = vmul.f32 %v2033, 1.442695
        %v2069 = vpow.pop %v2068
        %v2070 = vmul.f32 %v2034, 1.442695
        %v2071 = vpow.pop %v2070
        %v2072 = vmul.f32 %v2035, 1.442695
        %v2073 = vpow.pop %v2072
        %v2074 = vmul.f32 %v2036, 1.442695
        %v2075 = vpow.pop %v2074
        %v2076 = vmul.f32 %v2037, 1.442695
        %v2077 = vpow.pop %v2076
        %v2078 = vmul.f32 %v2038, 1.442695
        %v2079 = vpow.pop %v2078
        %v2080 = vmul.f32 %v2039, 1.442695
        %v2081 = vpow.pop %v2080
        %v2082 = vmul.f32 %v2040, 1.442695
        %v2083 = vpow.pop %v2082
        %v2084 = vmul.f32 %v2041, 1.442695
        %v2085 = vpow.pop %v2084
        %v2086 = vmul.f32 %v2042, 1.442695
        %v2087 = vpow.pop %v2086
        %v2088 = vmul.f32 %v2043, 1.442695
        %v2089 = vpow.pop %v2088
        %v2090 = vmul.f32 %v2044, 1.442695
        %v2091 = vpow.pop %v2090
        %v2092 = vmul.f32 %v2045, 1.442695
        %v2093 = vpow.pop %v2092
        %v2094 = vmul.f32 %v2046, 1.442695
        %v2095 = vpow.pop %v2094
        %v2096 = vmul.f32 %v2047, 1.442695
        %v2097 = vpow.pop %v2096
        %v2098 = vmul.f32 %v2048, 1.442695
        %v2099 = vpow.pop %v2098
        %v2100 = vmul.f32 %v2049, 1.442695
        %v2101 = vpow.pop %v2100
        %v2102 = vmul.f32 %v2050, 1.442695
        %v2103 = vpow.pop %v2102
        %v2104 = vmul.f32 %v2051, 1.442695
        %v2105 = vpow.pop %v2104
        %v2106 = vmul.f32 %v2052, 1.442695
        %v2107 = vpow.pop %v2106
        %v2108 = vmul.f32 %v2053, 1.442695
        %v2109 = vpow.pop %v2108
        %v2110 = vmul.f32 %v2054, 1.442695
        %v2111 = vpow.pop %v2110
        %v2112 = vmul.f32 %v2055, 1.442695
        %v2113 = vpow.pop %v2112
        %v2114 = vmul.f32 %v2056, 1.442695
        %v2115 = vpow.pop %v2114
        %v2116 = vmul.f32 %v2057, 1.442695
        %v2117 = vpow.pop %v2116
        %v2118 = vmul.f32 %v2058, 1.442695
        %v2119 = vpow.pop %v2118
        %v2120 = vmul.f32 %v2059, 1.442695
        %v2121 = vpow.pop %v2120
        %v2122 = vmul.f32 %v2060, 1.442695
        %v2123 = vpow.pop %v2122
        %v2124 = vmul.f32 %v2061, 1.442695
        %v2125 = vpow.pop %v2124
        %v2126 = vadd.f32 %v2063, 1.0
        %v2127 = vadd.f32 %v2065, 1.0
        %v2128 = vadd.f32 %v2067, 1.0
        %v2129 = vadd.f32 %v2069, 1.0
        %v2130 = vadd.f32 %v2071, 1.0
        %v2131 = vadd.f32 %v2073, 1.0
        %v2132 = vadd.f32 %v2075, 1.0
        %v2133 = vadd.f32 %v2077, 1.0
        %v2134 = vadd.f32 %v2079, 1.0
        %v2135 = vadd.f32 %v2081, 1.0
        %v2136 = vadd.f32 %v2083, 1.0
        %v2137 = vadd.f32 %v2085, 1.0
        %v2138 = vadd.f32 %v2087, 1.0
        %v2139 = vadd.f32 %v2089, 1.0
        %v2140 = vadd.f32 %v2091, 1.0
        %v2141 = vadd.f32 %v2093, 1.0
        %v2142 = vadd.f32 %v2095, 1.0
        %v2143 = vadd.f32 %v2097, 1.0
        %v2144 = vadd.f32 %v2099, 1.0
        %v2145 = vadd.f32 %v2101, 1.0
        %v2146 = vadd.f32 %v2103, 1.0
        %v2147 = vadd.f32 %v2105, 1.0
        %v2148 = vadd.f32 %v2107, 1.0
        %v2149 = vadd.f32 %v2109, 1.0
        %v2150 = vadd.f32 %v2111, 1.0
        %v2151 = vadd.f32 %v2113, 1.0
        %v2152 = vadd.f32 %v2115, 1.0
        %v2153 = vadd.f32 %v2117, 1.0
        %v2154 = vadd.f32 %v2119, 1.0
        %v2155 = vadd.f32 %v2121, 1.0
        %v2156 = vadd.f32 %v2123, 1.0
        %v2157 = vadd.f32 %v2125, 1.0
        %v2158 = vrcp.pop %v2126
        %v2159 = vmul.f32 1.0, %v2158
        %v2160 = vrcp.pop %v2127
        %v2161 = vmul.f32 1.0, %v2160
        %v2162 = vrcp.pop %v2128
        %v2163 = vmul.f32 1.0, %v2162
        %v2164 = vrcp.pop %v2129
        %v2165 = vmul.f32 1.0, %v2164
        %v2166 = vrcp.pop %v2130
        %v2167 = vmul.f32 1.0, %v2166
        %v2168 = vrcp.pop %v2131
        %v2169 = vmul.f32 1.0, %v2168
        %v2170 = vrcp.pop %v2132
        %v2171 = vmul.f32 1.0, %v2170
        %v2172 = vrcp.pop %v2133
        %v2173 = vmul.f32 1.0, %v2172
        %v2174 = vrcp.pop %v2134
        %v2175 = vmul.f32 1.0, %v2174
        %v2176 = vrcp.pop %v2135
        %v2177 = vmul.f32 1.0, %v2176
        %v2178 = vrcp.pop %v2136
        %v2179 = vmul.f32 1.0, %v2178
        %v2180 = vrcp.pop %v2137
        %v2181 = vmul.f32 1.0, %v2180
        %v2182 = vrcp.pop %v2138
        %v2183 = vmul.f32 1.0, %v2182
        %v2184 = vrcp.pop %v2139
        %v2185 = vmul.f32 1.0, %v2184
        %v2186 = vrcp.pop %v2140
        %v2187 = vmul.f32 1.0, %v2186
        %v2188 = vrcp.pop %v2141
        %v2189 = vmul.f32 1.0, %v2188
        %v2190 = vrcp.pop %v2142
        %v2191 = vmul.f32 1.0, %v2190
        %v2192 = vrcp.pop %v2143
        %v2193 = vmul.f32 1.0, %v2192
        %v2194 = vrcp.pop %v2144
        %v2195 = vmul.f32 1.0, %v2194
        %v2196 = vrcp.pop %v2145
        %v2197 = vmul.f32 1.0, %v2196
        %v2198 = vrcp.pop %v2146
        %v2199 = vmul.f32 1.0, %v2198
        %v2200 = vrcp.pop %v2147
        %v2201 = vmul.f32 1.0, %v2200
        %v2202 = vrcp.pop %v2148
        %v2203 = vmul.f32 1.0, %v2202
        %v2204 = vrcp.pop %v2149
        %v2205 = vmul.f32 1.0, %v2204
        %v2206 = vrcp.pop %v2150
        %v2207 = vmul.f32 1.0, %v2206
        %v2208 = vrcp.pop %v2151
        %v2209 = vmul.f32 1.0, %v2208
        %v2210 = vrcp.pop %v2152
        %v2211 = vmul.f32 1.0, %v2210
        %v2212 = vrcp.pop %v2153
        %v2213 = vmul.f32 1.0, %v2212
        %v2214 = vrcp.pop %v2154
        %v2215 = vmul.f32 1.0, %v2214
        %v2216 = vrcp.pop %v2155
        %v2217 = vmul.f32 1.0, %v2216
        %v2218 = vrcp.pop %v2156
        %v2219 = vmul.f32 1.0, %v2218
        %v2220 = vrcp.pop %v2157
        %v2221 = vmul.f32 1.0, %v2220
        %v2222 = vmul.f32 %v1998, %v2159
        %v2223 = vmul.f32 %v1999, %v2161
        %v2224 = vmul.f32 %v2000, %v2163
        %v2225 = vmul.f32 %v2001, %v2165
        %v2226 = vmul.f32 %v2002, %v2167
        %v2227 = vmul.f32 %v2003, %v2169
        %v2228 = vmul.f32 %v2004, %v2171
        %v2229 = vmul.f32 %v2005, %v2173
        %v2230 = vmul.f32 %v2006, %v2175
        %v2231 = vmul.f32 %v2007, %v2177
        %v2232 = vmul.f32 %v2008, %v2179
        %v2233 = vmul.f32 %v2009, %v2181
        %v2234 = vmul.f32 %v2010, %v2183
        %v2235 = vmul.f32 %v2011, %v2185
        %v2236 = vmul.f32 %v2012, %v2187
        %v2237 = vmul.f32 %v2013, %v2189
        %v2238 = vmul.f32 %v2014, %v2191
        %v2239 = vmul.f32 %v2015, %v2193
        %v2240 = vmul.f32 %v2016, %v2195
        %v2241 = vmul.f32 %v2017, %v2197
        %v2242 = vmul.f32 %v2018, %v2199
        %v2243 = vmul.f32 %v2019, %v2201
        %v2244 = vmul.f32 %v2020, %v2203
        %v2245 = vmul.f32 %v2021, %v2205
        %v2246 = vmul.f32 %v2022, %v2207
        %v2247 = vmul.f32 %v2023, %v2209
        %v2248 = vmul.f32 %v2024, %v2211
        %v2249 = vmul.f32 %v2025, %v2213
        %v2250 = vmul.f32 %v2026, %v2215
        %v2251 = vmul.f32 %v2027, %v2217
        %v2252 = vmul.f32 %v2028, %v2219
        %v2253 = vmul.f32 %v2029, %v2221
        %2254 = vst.msk [vmem:[%s334] sm:$0xff] %vm1569, %v2222
        %2255 = vst.msk [vmem:[%s334 + $0x8] sm:$0xff] %vm1569, %v2223
        %2256 = vst.msk [vmem:[%s334 + $0x10] sm:$0xff] %vm1569, %v2224
        %2257 = vst.msk [vmem:[%s334 + $0x18] sm:$0xff] %vm1569, %v2225
        %2258 = vst.msk [vmem:[%s334 + $0x20] sm:$0xff] %vm1569, %v2226
        %2259 = vst.msk [vmem:[%s334 + $0x28] sm:$0xff] %vm1569, %v2227
        %2260 = vst.msk [vmem:[%s334 + $0x30] sm:$0xff] %vm1569, %v2228
        %2261 = vst.msk [vmem:[%s334 + $0x38] sm:$0xff] %vm1569, %v2229
        %2262 = vst.msk [vmem:[%s334 + $0x40] sm:$0xff] %vm1569, %v2230
        %2263 = vst.msk [vmem:[%s334 + $0x48] sm:$0xff] %vm1569, %v2231
        %2264 = vst.msk [vmem:[%s334 + $0x50] sm:$0xff] %vm1569, %v2232
        %2265 = vst.msk [vmem:[%s334 + $0x58] sm:$0xff] %vm1569, %v2233
        %2266 = vst.msk [vmem:[%s334 + $0x60] sm:$0xff] %vm1569, %v2234
        %2267 = vst.msk [vmem:[%s334 + $0x68] sm:$0xff] %vm1569, %v2235
        %2268 = vst.msk [vmem:[%s334 + $0x70] sm:$0xff] %vm1569, %v2236
        %2269 = vst.msk [vmem:[%s334 + $0x78] sm:$0xff] %vm1569, %v2237
        %2270 = vst.msk [vmem:[%s334 + $0x80] sm:$0xff] %vm1569, %v2238
        %2271 = vst.msk [vmem:[%s334 + $0x88] sm:$0xff] %vm1569, %v2239
        %2272 = vst.msk [vmem:[%s334 + $0x90] sm:$0xff] %vm1569, %v2240
        %2273 = vst.msk [vmem:[%s334 + $0x98] sm:$0xff] %vm1569, %v2241
        %2274 = vst.msk [vmem:[%s334 + $0xa0] sm:$0xff] %vm1569, %v2242
        %2275 = vst.msk [vmem:[%s334 + $0xa8] sm:$0xff] %vm1569, %v2243
        %2276 = vst.msk [vmem:[%s334 + $0xb0] sm:$0xff] %vm1569, %v2244
        %2277 = vst.msk [vmem:[%s334 + $0xb8] sm:$0xff] %vm1569, %v2245
        %2278 = vst.msk [vmem:[%s334 + $0xc0] sm:$0xff] %vm1569, %v2246
        %2279 = vst.msk [vmem:[%s334 + $0xc8] sm:$0xff] %vm1569, %v2247
        %2280 = vst.msk [vmem:[%s334 + $0xd0] sm:$0xff] %vm1569, %v2248
        %2281 = vst.msk [vmem:[%s334 + $0xd8] sm:$0xff] %vm1569, %v2249
        %2282 = vst.msk [vmem:[%s334 + $0xe0] sm:$0xff] %vm1569, %v2250
        %2283 = vst.msk [vmem:[%s334 + $0xe8] sm:$0xff] %vm1569, %v2251
        %2284 = vst.msk [vmem:[%s334 + $0xf0] sm:$0xff] %vm1569, %v2252
        %2285 = vst.msk [vmem:[%s334 + $0xf8] sm:$0xff] %vm1569, %v2253
      $region60: #{tpu_custom_call.1} parent=51 // pred_fallthru
        _
      %p2286 = scmp.lt.s32.totalorder %s23, 1
      %s2287 = scalar_select %p2286, %s23, 1
      %s2288 = smul.addr %s2287, 32
      %s2289 = smul.addr %s2288, 8
      %s2290 = scalar_lea.vmem %s8, %s2289
      // Predicated region
      $region61: #{tpu_custom_call.1} parent=51 // pred_check
        %p2291 = pneg %p227
      $region62: #{tpu_custom_call.1} parent=51 // pred_check_branch
        %2293 = sbr.rel (%p2291) target = $region64
      $region63: #{tpu_custom_call.1} parent=51 // pred_region
        _
      $region64: #{tpu_custom_call.1} parent=51 // pred_fallthru
        _
    $region52: #{tpu_custom_call.1} parent=5 // pred_fallthru
      _
    %p2294 = scmp.le.s32.totalorder 2, %s14
    // Predicated region
    $region65: #{tpu_custom_call.1} parent=5 // pred_check
      %p2295 = pneg %p2294
    $region66: #{tpu_custom_call.1} parent=5 // pred_check_branch
      %2297 = sbr.rel (%p2295) target = $region68
    $region67: #{tpu_custom_call.1} parent=5 // pred_region
      %s2298 = ssub.s32 %s14, 2
      // Predicated region
      $region69: #{tpu_custom_call.1} parent=67 // pred_check
        %p2299 = pneg %p233
      $region70: #{tpu_custom_call.1} parent=67 // pred_check_branch
        %2301 = sbr.rel (%p2299) target = $region72
      $region71: #{tpu_custom_call.1} parent=67 // pred_region
        %p2302 = scmp.lt.s32.totalorder %s25, 1
        %s2303 = scalar_select %p2302, %s25, 1
        %s2304 = smul.addr %s2303, 32
        %s2305 = smul.addr %s2304, 8
        %s2306 = scalar_lea.vmem %s8, %s2305
      $region72: #{tpu_custom_call.1} parent=67 // pred_fallthru
        _
    $region68: #{tpu_custom_call.1} parent=5 // pred_fallthru
      _
  $region6: #{tpu_custom_call.1} parent=0 // loop_footer
    %s18 = sadd.s32 1, %s14
  $region7: #{tpu_custom_call.1} parent=0 // loop_footer_branch
    %13 = sbr.rel target = $region3
  $region8: #{tpu_custom_call.1} parent=0 // loop_exit
    _

</llo_original>
